<compile_context>
chip_gen: v7x
topology: tpu7x:2x2x1
jax: 0.10.0
libtpu: 0.0.40
codegen_flags: <defaults>
</compile_context>

<pallas_src>
import functools
import math

import jax
import jax.numpy as jnp
from jax import lax
from jax.experimental import pallas as pl
from jax.experimental.pallas import tpu as pltpu

EMBED_DIM = 128
NUM_HEADS = 8
HEAD_DIM = EMBED_DIM // NUM_HEADS  # 16


def _attention_core(qkv_scr, attn_scr, wo_ref, bo_ref, o_ref, *, batch_per_step, seq_len):
    """Per-(batch, head) attention + output projection shared by both kernel variants.

    qkv_scr : (rows, 3E) f32 scratch -- [Q_proj | K_proj | V_proj] lane-concatenated.
    attn_scr: (rows, E)  f32 scratch -- combined head outputs (lane-dense writes).
    """
    S, Hd, E = seq_len, HEAD_DIM, EMBED_DIM

    def batch_body(b, carry):
        r0 = b * S
        if S % 8 == 0:
            r0 = pl.multiple_of(r0, 8)           # sublane-aligned dynamic slice
        blk = qkv_scr[pl.ds(r0, S), :].astype(jnp.bfloat16)      # (S, 3E) bf16
        pv_heads = []
        for h in range(NUM_HEADS):                               # 8 heads, unrolled
            c = h * Hd
            q_h = blk[:, c:c + Hd]                               # (S, Hd)
            k_h = blk[:, E + c:E + c + Hd]                       # (S, Hd)
            v_h = blk[:, 2 * E + c:2 * E + c + Hd]               # (S, Hd)
            # NT contraction on head_dim: no explicit K transpose needed.
            s = lax.dot_general(q_h, k_h, (((1,), (1,)), ((), ())),
                                preferred_element_type=jnp.float32)   # (S, S) f32
            s = s - jnp.max(s, axis=-1, keepdims=True)
            p = jnp.exp(s)                                       # unnormalized probs
            denom = jnp.sum(p, axis=-1, keepdims=True)           # (S, 1) f32
            pv = jnp.dot(p.astype(jnp.bfloat16), v_h,
                         preferred_element_type=jnp.float32)     # (S, Hd) f32
            # Deferred softmax normalization on the small result (EUP reciprocal).
            pv_heads.append(pv * pl.reciprocal(denom, approx=True))
        # One lane-dense (S, E) store instead of eight masked 16-lane stores.
        attn_scr[pl.ds(r0, S), :] = jnp.concatenate(pv_heads, axis=-1)
        return carry

    lax.fori_loop(0, batch_per_step, batch_body, 0)

    # Output projection over the whole row block at once (M = rows, K = E = 128).
    out = jnp.dot(attn_scr[...].astype(jnp.bfloat16), wo_ref[...],
                  preferred_element_type=jnp.float32) + bo_ref[...]
    o_ref[...] = out.astype(o_ref.dtype)


def _mha_kernel(q_ref, k_ref, v_ref,
                wq_ref, bq_ref, wk_ref, bk_ref, wv_ref, bv_ref,
                wo_ref, bo_ref,
                o_ref, qkv_scr, attn_scr,
                *, batch_per_step, seq_len):
    """General (cross-attention) path: distinct q/k/v inputs, three projection matmuls."""
    E = EMBED_DIM
    # bf16 operands -> MXU, f32 accumulation; scale already folded into wq/bq.
    # 128-lane-aligned full-width stores into the shared QKV scratch slab.
    qkv_scr[:, 0:E] = (jnp.dot(q_ref[...], wq_ref[...],
                               preferred_element_type=jnp.float32) + bq_ref[...])
    qkv_scr[:, E:2 * E] = (jnp.dot(k_ref[...], wk_ref[...],
                                   preferred_element_type=jnp.float32) + bk_ref[...])
    qkv_scr[:, 2 * E:3 * E] = (jnp.dot(v_ref[...], wv_ref[...],
                                       preferred_element_type=jnp.float32) + bv_ref[...])
    _attention_core(qkv_scr, attn_scr, wo_ref, bo_ref, o_ref,
                    batch_per_step=batch_per_step, seq_len=seq_len)


def _mha_fused_kernel(x_ref, wqkv_ref, bqkv_ref, wo_ref, bo_ref,
                      o_ref, qkv_scr, attn_scr,
                      *, batch_per_step, seq_len):
    """Self-attention fast path: one fused (R,128)x(128,384) QKV projection matmul."""
    qkv_scr[...] = (jnp.dot(x_ref[...], wqkv_ref[...],
                            preferred_element_type=jnp.float32) + bqkv_ref[...])
    _attention_core(qkv_scr, attn_scr, wo_ref, bo_ref, o_ref,
                    batch_per_step=batch_per_step, seq_len=seq_len)


def multi_head_attention(q, k, v, params, *, batch_per_step=None):
    """q, k, v: (B, S, E) float32.  params: dict of transposed f32 weights & biases."""
    B, S, E = q.shape
    assert E == EMBED_DIM
    assert k.shape == (B, S, E) and v.shape == (B, S, E)

    scale = 1.0 / math.sqrt(HEAD_DIM)

    # bf16 weights for the MXU (halves weight DMA); fold softmax scale into Q projection.
    wq = (params["wq_t"] * scale).astype(jnp.bfloat16)
    bq = (params["bq"] * scale).astype(jnp.float32)
    wk = params["wk_t"].astype(jnp.bfloat16)
    bk = params["bk"].astype(jnp.float32)
    wv = params["wv_t"].astype(jnp.bfloat16)
    bv = params["bv"].astype(jnp.float32)
    wo = params["wo_t"].astype(jnp.bfloat16)
    bo = params["bo"].astype(jnp.float32)

    self_attention = (q is k) and (k is v)

    # Flatten (B, S) into a lane-dense row axis; bf16 activations halve HBM traffic.
    q2 = q.reshape(B * S, E).astype(jnp.bfloat16)

    # Rows per grid step: big blocks (target ~1024 rows) amortize the ~0.35us/step
    # pipeline overhead; keep n_steps >= 2 when possible so the "parallel" grid axis
    # shards across both v7x TensorCores.  bf16 input blocks stay 16-sublane aligned,
    # otherwise collapse to a single full-slab step (full array dims are always legal).
    if batch_per_step is None:
        batch_per_step = max(1, min(B, 1024 // max(S, 1)))
        if B >= 2 and batch_per_step >= B:
            batch_per_step = max(1, B // 2)
    batch_per_step = min(batch_per_step, B)
    while B % batch_per_step:
        batch_per_step -= 1
    rows = batch_per_step * S
    if rows % 16 != 0 and batch_per_step != B:
        batch_per_step = B
        rows = B * S
    n_steps = B // batch_per_step

    act_spec = pl.BlockSpec((rows, E), lambda i: (i, 0))
    w_spec = pl.BlockSpec((E, E), lambda i: (0, 0))
    b_spec = pl.BlockSpec((1, E), lambda i: (0, 0))

    cost = pl.CostEstimate(
        flops=8 * B * S * E * E + 4 * B * S * S * E,
        transcendentals=B * NUM_HEADS * S * S,
        bytes_accessed=3 * B * S * E * 2 + B * S * E * 4 + 4 * E * E * 2 + 4 * E * 4,
    )

    scratch_shapes = [pltpu.VMEM((rows, 3 * E), jnp.float32),   # QKV projections
                      pltpu.VMEM((rows, E), jnp.float32)]       # combined head outputs

    if self_attention:
        wqkv = jnp.concatenate([wq, wk, wv], axis=1)            # (E, 3E) bf16
        bqkv = jnp.concatenate([bq, bk, bv], axis=1)            # (1, 3E) f32
        kernel = functools.partial(_mha_fused_kernel,
                                   batch_per_step=batch_per_step, seq_len=S)
        in_specs = [act_spec,
                    pl.BlockSpec((E, 3 * E), lambda i: (0, 0)),
                    pl.BlockSpec((1, 3 * E), lambda i: (0, 0)),
                    w_spec, b_spec]
        args = (q2, wqkv, bqkv, wo, bo)
    else:
        k2 = k.reshape(B * S, E).astype(jnp.bfloat16)
        v2 = v.reshape(B * S, E).astype(jnp.bfloat16)
        kernel = functools.partial(_mha_kernel,
                                   batch_per_step=batch_per_step, seq_len=S)
        in_specs = [act_spec, act_spec, act_spec,
                    w_spec, b_spec, w_spec, b_spec, w_spec, b_spec,
                    w_spec, b_spec]
        args = (q2, k2, v2, wq, bq, wk, bk, wv, bv, wo, bo)

    out2 = pl.pallas_call(
        kernel,
        out_shape=jax.ShapeDtypeStruct((B * S, E), jnp.float32),
        grid_spec=pltpu.PrefetchScalarGridSpec(
            num_scalar_prefetch=0,
            grid=(n_steps,),
            in_specs=in_specs,
            out_specs=act_spec,
            scratch_shapes=scratch_shapes,
        ),
        compiler_params=pltpu.CompilerParams(
            dimension_semantics=("parallel",)),
        cost_estimate=cost,
    )(*args)

    return out2.reshape(B, S, E)


def _reference(q, k, v, params):
    """Pure-JAX f32 reference mirroring the PyTorch module exactly."""
    B, S, E = q.shape
    H, Hd = NUM_HEADS, HEAD_DIM

    def lin(x, wt, b):
        return x @ wt + b  # wt is (in, out) == W.T

    qp = lin(q, params["wq_t"], params["bq"][0])
    kp = lin(k, params["wk_t"], params["bk"][0])
    vp = lin(v, params["wv_t"], params["bv"][0])

    def split(x):
        return x.reshape(B, S, H, Hd).transpose(0, 2, 1, 3)  # (B, H, S, Hd)

    qh, kh, vh = split(qp), split(kp), split(vp)
    scores = jnp.einsum("bhqd,bhkd->bhqk", qh, kh) / math.sqrt(Hd)
    probs = jax.nn.softmax(scores, axis=-1)
    out = jnp.einsum("bhqk,bhkd->bhqd", probs, vh)
    out = out.transpose(0, 2, 1, 3).reshape(B, S, E)
    return lin(out, params["wo_t"], params["bo"][0])


def _init_params(key):
    ks = jax.random.split(key, 8)
    scale = 0.02

    def w(k):
        # PyTorch weight is (out, in); store transposed (in, out).
        return scale * jax.random.normal(k, (EMBED_DIM, EMBED_DIM), jnp.float32)

    def b(k):
        return scale * jax.random.normal(k, (1, EMBED_DIM), jnp.float32)

    return {
        "wq_t": w(ks[0]), "bq": b(ks[1]),
        "wk_t": w(ks[2]), "bk": b(ks[3]),
        "wv_t": w(ks[4]), "bv": b(ks[5]),
        "wo_t": w(ks[6]), "bo": b(ks[7]),
    }


if __name__ == "__main__":
    key = jax.random.PRNGKey(0)
    kp, kq, kk, kv = jax.random.split(key, 4)

    B, S = 2, 8
    params = _init_params(kp)
    q = jax.random.normal(kq, (B, S, EMBED_DIM), jnp.float32)
    k = jax.random.normal(kk, (B, S, EMBED_DIM), jnp.float32)
    v = jax.random.normal(kv, (B, S, EMBED_DIM), jnp.float32)

    # Cross-attention path (distinct q/k/v -> three projection matmuls).
    out = jax.block_until_ready(multi_head_attention(q, k, v, params))
    ref = jax.block_until_ready(_reference(q, k, v, params))
    assert out.shape == (B, S, EMBED_DIM)
    # bf16 MXU operands with f32 accumulation: expect ~1e-2-level agreement vs f32 ref.
    assert jnp.allclose(out, ref, atol=2e-2, rtol=2e-2), "cross-attn mismatch vs reference"

    # Self-attention fast path (q is k is v -> fused (128, 384) QKV projection).
    out_self = jax.block_until_ready(multi_head_attention(q, q, q, params))
    ref_self = jax.block_until_ready(_reference(q, q, q, params))
    assert jnp.allclose(out_self, ref_self, atol=2e-2, rtol=2e-2), "self-attn mismatch vs reference"

    print("KERNEL_OK")
</pallas_src>

<mosaic_0001>
module attributes {stable_mosaic.version = 11 : i64} {
  func.func @_mha_kernel(%arg0: i32, %arg1: memref<16x128xbf16, #tpu.memory_space<vmem>>, %arg2: memref<16x128xbf16, #tpu.memory_space<vmem>>, %arg3: memref<16x128xbf16, #tpu.memory_space<vmem>>, %arg4: memref<128x128xbf16, #tpu.memory_space<vmem>>, %arg5: memref<1x128xf32, #tpu.memory_space<vmem>>, %arg6: memref<128x128xbf16, #tpu.memory_space<vmem>>, %arg7: memref<1x128xf32, #tpu.memory_space<vmem>>, %arg8: memref<128x128xbf16, #tpu.memory_space<vmem>>, %arg9: memref<1x128xf32, #tpu.memory_space<vmem>>, %arg10: memref<128x128xbf16, #tpu.memory_space<vmem>>, %arg11: memref<1x128xf32, #tpu.memory_space<vmem>>, %arg12: memref<16x128xf32, #tpu.memory_space<vmem>>, %arg13: memref<16x384xf32, #tpu.memory_space<vmem>>, %arg14: memref<16x128xf32, #tpu.memory_space<vmem>>) attributes {dimension_semantics = [#tpu.dimension_semantics<parallel>], iteration_bounds = array<i64: 1>, scalar_prefetch = 0 : i64, scratch_operands = 2 : i64, tpu.core_type = #tpu.core_type<tc>, window_params = [{transform_indices = @transform_0, window_bounds = array<i64: 16, 128>}, {transform_indices = @transform_1, window_bounds = array<i64: 16, 128>}, {transform_indices = @transform_2, window_bounds = array<i64: 16, 128>}, {pipeline_mode = #tpu.pipeline_mode<synchronous>, transform_indices = @transform_3, window_bounds = array<i64: 128, 128>}, {pipeline_mode = #tpu.pipeline_mode<synchronous>, transform_indices = @transform_4, window_bounds = array<i64: 1, 128>}, {pipeline_mode = #tpu.pipeline_mode<synchronous>, transform_indices = @transform_5, window_bounds = array<i64: 128, 128>}, {pipeline_mode = #tpu.pipeline_mode<synchronous>, transform_indices = @transform_6, window_bounds = array<i64: 1, 128>}, {pipeline_mode = #tpu.pipeline_mode<synchronous>, transform_indices = @transform_7, window_bounds = array<i64: 128, 128>}, {pipeline_mode = #tpu.pipeline_mode<synchronous>, transform_indices = @transform_8, window_bounds = array<i64: 1, 128>}, {pipeline_mode = #tpu.pipeline_mode<synchronous>, transform_indices = @transform_9, window_bounds = array<i64: 128, 128>}, {pipeline_mode = #tpu.pipeline_mode<synchronous>, transform_indices = @transform_10, window_bounds = array<i64: 1, 128>}, {transform_indices = @transform_11, window_bounds = array<i64: 16, 128>}]} {
    %c0 = arith.constant 0 : index
    %c0_0 = arith.constant 0 : index
    %0 = vector.load %arg1[%c0, %c0_0] : memref<16x128xbf16, #tpu.memory_space<vmem>>, vector<16x128xbf16>
    %c0_1 = arith.constant 0 : index
    %c0_2 = arith.constant 0 : index
    %1 = vector.load %arg4[%c0_1, %c0_2] : memref<128x128xbf16, #tpu.memory_space<vmem>>, vector<128x128xbf16>
    %cst = arith.constant dense<0.000000e+00> : vector<16x128xf32>
    %2 = tpu.matmul %0, %1, %cst {dimension_numbers = #tpu.dot_dimension_numbers<[1], [0], [0], [1], [0, 0, 1, 1], [], []>} : vector<16x128xbf16>, vector<128x128xbf16>, vector<16x128xf32> -> vector<16x128xf32>
    %c0_3 = arith.constant 0 : index
    %c0_4 = arith.constant 0 : index
    %3 = vector.load %arg5[%c0_3, %c0_4] : memref<1x128xf32, #tpu.memory_space<vmem>>, vector<1x128xf32>
    %4 = vector.broadcast %3 : vector<1x128xf32> to vector<16x128xf32>
    %5 = arith.addf %2, %4 : vector<16x128xf32>
    %c0_5 = arith.constant 0 : index
    %c0_6 = arith.constant 0 : index
    %6 = vector.load %arg13[%c0_5, %c0_6] : memref<16x384xf32, #tpu.memory_space<vmem>>, vector<16x128xf32>
    tpu.vector_store %arg13[%c0_5, %c0_6], %5 {strides = array<i32>} : memref<16x384xf32, #tpu.memory_space<vmem>>, vector<16x128xf32>,
    %c0_7 = arith.constant 0 : index
    %c0_8 = arith.constant 0 : index
    %7 = vector.load %arg2[%c0_7, %c0_8] : memref<16x128xbf16, #tpu.memory_space<vmem>>, vector<16x128xbf16>
    %c0_9 = arith.constant 0 : index
    %c0_10 = arith.constant 0 : index
    %8 = vector.load %arg6[%c0_9, %c0_10] : memref<128x128xbf16, #tpu.memory_space<vmem>>, vector<128x128xbf16>
    %cst_11 = arith.constant dense<0.000000e+00> : vector<16x128xf32>
    %9 = tpu.matmul %7, %8, %cst_11 {dimension_numbers = #tpu.dot_dimension_numbers<[1], [0], [0], [1], [0, 0, 1, 1], [], []>} : vector<16x128xbf16>, vector<128x128xbf16>, vector<16x128xf32> -> vector<16x128xf32>
    %c0_12 = arith.constant 0 : index
    %c0_13 = arith.constant 0 : index
    %10 = vector.load %arg7[%c0_12, %c0_13] : memref<1x128xf32, #tpu.memory_space<vmem>>, vector<1x128xf32>
    %11 = vector.broadcast %10 : vector<1x128xf32> to vector<16x128xf32>
    %12 = arith.addf %9, %11 : vector<16x128xf32>
    %c0_14 = arith.constant 0 : index
    %c128 = arith.constant 128 : index
    %13 = vector.load %arg13[%c0_14, %c128] : memref<16x384xf32, #tpu.memory_space<vmem>>, vector<16x128xf32>
    tpu.vector_store %arg13[%c0_14, %c128], %12 {strides = array<i32>} : memref<16x384xf32, #tpu.memory_space<vmem>>, vector<16x128xf32>,
    %c0_15 = arith.constant 0 : index
    %c0_16 = arith.constant 0 : index
    %14 = vector.load %arg3[%c0_15, %c0_16] : memref<16x128xbf16, #tpu.memory_space<vmem>>, vector<16x128xbf16>
    %c0_17 = arith.constant 0 : index
    %c0_18 = arith.constant 0 : index
    %15 = vector.load %arg8[%c0_17, %c0_18] : memref<128x128xbf16, #tpu.memory_space<vmem>>, vector<128x128xbf16>
    %cst_19 = arith.constant dense<0.000000e+00> : vector<16x128xf32>
    %16 = tpu.matmul %14, %15, %cst_19 {dimension_numbers = #tpu.dot_dimension_numbers<[1], [0], [0], [1], [0, 0, 1, 1], [], []>} : vector<16x128xbf16>, vector<128x128xbf16>, vector<16x128xf32> -> vector<16x128xf32>
    %c0_20 = arith.constant 0 : index
    %c0_21 = arith.constant 0 : index
    %17 = vector.load %arg9[%c0_20, %c0_21] : memref<1x128xf32, #tpu.memory_space<vmem>>, vector<1x128xf32>
    %18 = vector.broadcast %17 : vector<1x128xf32> to vector<16x128xf32>
    %19 = arith.addf %16, %18 : vector<16x128xf32>
    %c0_22 = arith.constant 0 : index
    %c256 = arith.constant 256 : index
    %20 = vector.load %arg13[%c0_22, %c256] : memref<16x384xf32, #tpu.memory_space<vmem>>, vector<16x128xf32>
    tpu.vector_store %arg13[%c0_22, %c256], %19 {strides = array<i32>} : memref<16x384xf32, #tpu.memory_space<vmem>>, vector<16x128xf32>,
    %c0_i32 = arith.constant 0 : i32
    %c2_i32 = arith.constant 2 : i32
    %21 = arith.addi %c0_i32, %c2_i32 : i32
    %c1_i32 = arith.constant 1 : i32
    scf.for %arg15 = %c0_i32 to %21 step %c1_i32  : i32 {
      %c8_i32 = arith.constant 8 : i32
      %30 = arith.muli %arg15, %c8_i32 : i32
      %31 = tpu.assume_multiple %30, 8 : i32
      %32 = arith.index_cast %31 : i32 to index
      %c0_33 = arith.constant 0 : index
      %33 = vector.load %arg13[%32, %c0_33] : memref<16x384xf32, #tpu.memory_space<vmem>>, vector<8x384xf32>
      %34 = arith.truncf %33 : vector<8x384xf32> to vector<8x384xbf16>
      %35 = vector.extract_strided_slice %34 {offsets = [0, 0], sizes = [8, 16], strides = [1, 1]} : vector<8x384xbf16> to vector<8x16xbf16>
      %36 = vector.extract_strided_slice %34 {offsets = [0, 128], sizes = [8, 16], strides = [1, 1]} : vector<8x384xbf16> to vector<8x16xbf16>
      %37 = vector.extract_strided_slice %34 {offsets = [0, 256], sizes = [8, 16], strides = [1, 1]} : vector<8x384xbf16> to vector<8x16xbf16>
      %cst_34 = arith.constant dense<0.000000e+00> : vector<8x8xf32>
      %38 = tpu.matmul %35, %36, %cst_34 {dimension_numbers = #tpu.dot_dimension_numbers<[1], [1], [0], [0], [0, 0, 1, 0], [], []>} : vector<8x16xbf16>, vector<8x16xbf16>, vector<8x8xf32> -> vector<8x8xf32>
      %cst_35 = arith.constant dense<0xFF800000> : vector<8xf32>
      %39 = vector.multi_reduction <maximumf>, %38, %cst_35 [1] : vector<8x8xf32> to vector<8xf32>
      %40 = vector.shape_cast %39 : vector<8xf32> to vector<8x1xf32>
      %41 = vector.broadcast %40 : vector<8x1xf32> to vector<8x8xf32>
      %42 = arith.subf %38, %41 : vector<8x8xf32>
      %43 = math.exp %42 : vector<8x8xf32>
      %cst_36 = arith.constant dense<0.000000e+00> : vector<8xf32>
      %44 = vector.multi_reduction <add>, %43, %cst_36 [1] : vector<8x8xf32> to vector<8xf32>
      %45 = vector.shape_cast %44 : vector<8xf32> to vector<8x1xf32>
      %46 = arith.truncf %43 : vector<8x8xf32> to vector<8x8xbf16>
      %cst_37 = arith.constant dense<0.000000e+00> : vector<8x16xf32>
      %47 = tpu.matmul %46, %37, %cst_37 {dimension_numbers = #tpu.dot_dimension_numbers<[1], [0], [0], [1], [0, 0, 1, 1], [], []>} : vector<8x8xbf16>, vector<8x16xbf16>, vector<8x16xf32> -> vector<8x16xf32>
      %48 = tpu.reciprocal %45 {approx = true} : vector<8x1xf32> -> vector<8x1xf32>
      %49 = vector.broadcast %48 : vector<8x1xf32> to vector<8x16xf32>
      %50 = arith.mulf %47, %49 : vector<8x16xf32>
      %51 = vector.extract_strided_slice %34 {offsets = [0, 16], sizes = [8, 16], strides = [1, 1]} : vector<8x384xbf16> to vector<8x16xbf16>
      %52 = vector.extract_strided_slice %34 {offsets = [0, 144], sizes = [8, 16], strides = [1, 1]} : vector<8x384xbf16> to vector<8x16xbf16>
      %53 = vector.extract_strided_slice %34 {offsets = [0, 272], sizes = [8, 16], strides = [1, 1]} : vector<8x384xbf16> to vector<8x16xbf16>
      %cst_38 = arith.constant dense<0.000000e+00> : vector<8x8xf32>
      %54 = tpu.matmul %51, %52, %cst_38 {dimension_numbers = #tpu.dot_dimension_numbers<[1], [1], [0], [0], [0, 0, 1, 0], [], []>} : vector<8x16xbf16>, vector<8x16xbf16>, vector<8x8xf32> -> vector<8x8xf32>
      %cst_39 = arith.constant dense<0xFF800000> : vector<8xf32>
      %55 = vector.multi_reduction <maximumf>, %54, %cst_39 [1] : vector<8x8xf32> to vector<8xf32>
      %56 = vector.shape_cast %55 : vector<8xf32> to vector<8x1xf32>
      %57 = vector.broadcast %56 : vector<8x1xf32> to vector<8x8xf32>
      %58 = arith.subf %54, %57 : vector<8x8xf32>
      %59 = math.exp %58 : vector<8x8xf32>
      %cst_40 = arith.constant dense<0.000000e+00> : vector<8xf32>
      %60 = vector.multi_reduction <add>, %59, %cst_40 [1] : vector<8x8xf32> to vector<8xf32>
      %61 = vector.shape_cast %60 : vector<8xf32> to vector<8x1xf32>
      %62 = arith.truncf %59 : vector<8x8xf32> to vector<8x8xbf16>
      %cst_41 = arith.constant dense<0.000000e+00> : vector<8x16xf32>
      %63 = tpu.matmul %62, %53, %cst_41 {dimension_numbers = #tpu.dot_dimension_numbers<[1], [0], [0], [1], [0, 0, 1, 1], [], []>} : vector<8x8xbf16>, vector<8x16xbf16>, vector<8x16xf32> -> vector<8x16xf32>
      %64 = tpu.reciprocal %61 {approx = true} : vector<8x1xf32> -> vector<8x1xf32>
      %65 = vector.broadcast %64 : vector<8x1xf32> to vector<8x16xf32>
      %66 = arith.mulf %63, %65 : vector<8x16xf32>
      %67 = vector.extract_strided_slice %34 {offsets = [0, 32], sizes = [8, 16], strides = [1, 1]} : vector<8x384xbf16> to vector<8x16xbf16>
      %68 = vector.extract_strided_slice %34 {offsets = [0, 160], sizes = [8, 16], strides = [1, 1]} : vector<8x384xbf16> to vector<8x16xbf16>
      %69 = vector.extract_strided_slice %34 {offsets = [0, 288], sizes = [8, 16], strides = [1, 1]} : vector<8x384xbf16> to vector<8x16xbf16>
      %cst_42 = arith.constant dense<0.000000e+00> : vector<8x8xf32>
      %70 = tpu.matmul %67, %68, %cst_42 {dimension_numbers = #tpu.dot_dimension_numbers<[1], [1], [0], [0], [0, 0, 1, 0], [], []>} : vector<8x16xbf16>, vector<8x16xbf16>, vector<8x8xf32> -> vector<8x8xf32>
      %cst_43 = arith.constant dense<0xFF800000> : vector<8xf32>
      %71 = vector.multi_reduction <maximumf>, %70, %cst_43 [1] : vector<8x8xf32> to vector<8xf32>
      %72 = vector.shape_cast %71 : vector<8xf32> to vector<8x1xf32>
      %73 = vector.broadcast %72 : vector<8x1xf32> to vector<8x8xf32>
      %74 = arith.subf %70, %73 : vector<8x8xf32>
      %75 = math.exp %74 : vector<8x8xf32>
      %cst_44 = arith.constant dense<0.000000e+00> : vector<8xf32>
      %76 = vector.multi_reduction <add>, %75, %cst_44 [1] : vector<8x8xf32> to vector<8xf32>
      %77 = vector.shape_cast %76 : vector<8xf32> to vector<8x1xf32>
      %78 = arith.truncf %75 : vector<8x8xf32> to vector<8x8xbf16>
      %cst_45 = arith.constant dense<0.000000e+00> : vector<8x16xf32>
      %79 = tpu.matmul %78, %69, %cst_45 {dimension_numbers = #tpu.dot_dimension_numbers<[1], [0], [0], [1], [0, 0, 1, 1], [], []>} : vector<8x8xbf16>, vector<8x16xbf16>, vector<8x16xf32> -> vector<8x16xf32>
      %80 = tpu.reciprocal %77 {approx = true} : vector<8x1xf32> -> vector<8x1xf32>
      %81 = vector.broadcast %80 : vector<8x1xf32> to vector<8x16xf32>
      %82 = arith.mulf %79, %81 : vector<8x16xf32>
      %83 = vector.extract_strided_slice %34 {offsets = [0, 48], sizes = [8, 16], strides = [1, 1]} : vector<8x384xbf16> to vector<8x16xbf16>
      %84 = vector.extract_strided_slice %34 {offsets = [0, 176], sizes = [8, 16], strides = [1, 1]} : vector<8x384xbf16> to vector<8x16xbf16>
      %85 = vector.extract_strided_slice %34 {offsets = [0, 304], sizes = [8, 16], strides = [1, 1]} : vector<8x384xbf16> to vector<8x16xbf16>
      %cst_46 = arith.constant dense<0.000000e+00> : vector<8x8xf32>
      %86 = tpu.matmul %83, %84, %cst_46 {dimension_numbers = #tpu.dot_dimension_numbers<[1], [1], [0], [0], [0, 0, 1, 0], [], []>} : vector<8x16xbf16>, vector<8x16xbf16>, vector<8x8xf32> -> vector<8x8xf32>
      %cst_47 = arith.constant dense<0xFF800000> : vector<8xf32>
      %87 = vector.multi_reduction <maximumf>, %86, %cst_47 [1] : vector<8x8xf32> to vector<8xf32>
      %88 = vector.shape_cast %87 : vector<8xf32> to vector<8x1xf32>
      %89 = vector.broadcast %88 : vector<8x1xf32> to vector<8x8xf32>
      %90 = arith.subf %86, %89 : vector<8x8xf32>
      %91 = math.exp %90 : vector<8x8xf32>
      %cst_48 = arith.constant dense<0.000000e+00> : vector<8xf32>
      %92 = vector.multi_reduction <add>, %91, %cst_48 [1] : vector<8x8xf32> to vector<8xf32>
      %93 = vector.shape_cast %92 : vector<8xf32> to vector<8x1xf32>
      %94 = arith.truncf %91 : vector<8x8xf32> to vector<8x8xbf16>
      %cst_49 = arith.constant dense<0.000000e+00> : vector<8x16xf32>
      %95 = tpu.matmul %94, %85, %cst_49 {dimension_numbers = #tpu.dot_dimension_numbers<[1], [0], [0], [1], [0, 0, 1, 1], [], []>} : vector<8x8xbf16>, vector<8x16xbf16>, vector<8x16xf32> -> vector<8x16xf32>
      %96 = tpu.reciprocal %93 {approx = true} : vector<8x1xf32> -> vector<8x1xf32>
      %97 = vector.broadcast %96 : vector<8x1xf32> to vector<8x16xf32>
      %98 = arith.mulf %95, %97 : vector<8x16xf32>
      %99 = vector.extract_strided_slice %34 {offsets = [0, 64], sizes = [8, 16], strides = [1, 1]} : vector<8x384xbf16> to vector<8x16xbf16>
      %100 = vector.extract_strided_slice %34 {offsets = [0, 192], sizes = [8, 16], strides = [1, 1]} : vector<8x384xbf16> to vector<8x16xbf16>
      %101 = vector.extract_strided_slice %34 {offsets = [0, 320], sizes = [8, 16], strides = [1, 1]} : vector<8x384xbf16> to vector<8x16xbf16>
      %cst_50 = arith.constant dense<0.000000e+00> : vector<8x8xf32>
      %102 = tpu.matmul %99, %100, %cst_50 {dimension_numbers = #tpu.dot_dimension_numbers<[1], [1], [0], [0], [0, 0, 1, 0], [], []>} : vector<8x16xbf16>, vector<8x16xbf16>, vector<8x8xf32> -> vector<8x8xf32>
      %cst_51 = arith.constant dense<0xFF800000> : vector<8xf32>
      %103 = vector.multi_reduction <maximumf>, %102, %cst_51 [1] : vector<8x8xf32> to vector<8xf32>
      %104 = vector.shape_cast %103 : vector<8xf32> to vector<8x1xf32>
      %105 = vector.broadcast %104 : vector<8x1xf32> to vector<8x8xf32>
      %106 = arith.subf %102, %105 : vector<8x8xf32>
      %107 = math.exp %106 : vector<8x8xf32>
      %cst_52 = arith.constant dense<0.000000e+00> : vector<8xf32>
      %108 = vector.multi_reduction <add>, %107, %cst_52 [1] : vector<8x8xf32> to vector<8xf32>
      %109 = vector.shape_cast %108 : vector<8xf32> to vector<8x1xf32>
      %110 = arith.truncf %107 : vector<8x8xf32> to vector<8x8xbf16>
      %cst_53 = arith.constant dense<0.000000e+00> : vector<8x16xf32>
      %111 = tpu.matmul %110, %101, %cst_53 {dimension_numbers = #tpu.dot_dimension_numbers<[1], [0], [0], [1], [0, 0, 1, 1], [], []>} : vector<8x8xbf16>, vector<8x16xbf16>, vector<8x16xf32> -> vector<8x16xf32>
      %112 = tpu.reciprocal %109 {approx = true} : vector<8x1xf32> -> vector<8x1xf32>
      %113 = vector.broadcast %112 : vector<8x1xf32> to vector<8x16xf32>
      %114 = arith.mulf %111, %113 : vector<8x16xf32>
      %115 = vector.extract_strided_slice %34 {offsets = [0, 80], sizes = [8, 16], strides = [1, 1]} : vector<8x384xbf16> to vector<8x16xbf16>
      %116 = vector.extract_strided_slice %34 {offsets = [0, 208], sizes = [8, 16], strides = [1, 1]} : vector<8x384xbf16> to vector<8x16xbf16>
      %117 = vector.extract_strided_slice %34 {offsets = [0, 336], sizes = [8, 16], strides = [1, 1]} : vector<8x384xbf16> to vector<8x16xbf16>
      %cst_54 = arith.constant dense<0.000000e+00> : vector<8x8xf32>
      %118 = tpu.matmul %115, %116, %cst_54 {dimension_numbers = #tpu.dot_dimension_numbers<[1], [1], [0], [0], [0, 0, 1, 0], [], []>} : vector<8x16xbf16>, vector<8x16xbf16>, vector<8x8xf32> -> vector<8x8xf32>
      %cst_55 = arith.constant dense<0xFF800000> : vector<8xf32>
      %119 = vector.multi_reduction <maximumf>, %118, %cst_55 [1] : vector<8x8xf32> to vector<8xf32>
      %120 = vector.shape_cast %119 : vector<8xf32> to vector<8x1xf32>
      %121 = vector.broadcast %120 : vector<8x1xf32> to vector<8x8xf32>
      %122 = arith.subf %118, %121 : vector<8x8xf32>
      %123 = math.exp %122 : vector<8x8xf32>
      %cst_56 = arith.constant dense<0.000000e+00> : vector<8xf32>
      %124 = vector.multi_reduction <add>, %123, %cst_56 [1] : vector<8x8xf32> to vector<8xf32>
      %125 = vector.shape_cast %124 : vector<8xf32> to vector<8x1xf32>
      %126 = arith.truncf %123 : vector<8x8xf32> to vector<8x8xbf16>
      %cst_57 = arith.constant dense<0.000000e+00> : vector<8x16xf32>
      %127 = tpu.matmul %126, %117, %cst_57 {dimension_numbers = #tpu.dot_dimension_numbers<[1], [0], [0], [1], [0, 0, 1, 1], [], []>} : vector<8x8xbf16>, vector<8x16xbf16>, vector<8x16xf32> -> vector<8x16xf32>
      %128 = tpu.reciprocal %125 {approx = true} : vector<8x1xf32> -> vector<8x1xf32>
      %129 = vector.broadcast %128 : vector<8x1xf32> to vector<8x16xf32>
      %130 = arith.mulf %127, %129 : vector<8x16xf32>
      %131 = vector.extract_strided_slice %34 {offsets = [0, 96], sizes = [8, 16], strides = [1, 1]} : vector<8x384xbf16> to vector<8x16xbf16>
      %132 = vector.extract_strided_slice %34 {offsets = [0, 224], sizes = [8, 16], strides = [1, 1]} : vector<8x384xbf16> to vector<8x16xbf16>
      %133 = vector.extract_strided_slice %34 {offsets = [0, 352], sizes = [8, 16], strides = [1, 1]} : vector<8x384xbf16> to vector<8x16xbf16>
      %cst_58 = arith.constant dense<0.000000e+00> : vector<8x8xf32>
      %134 = tpu.matmul %131, %132, %cst_58 {dimension_numbers = #tpu.dot_dimension_numbers<[1], [1], [0], [0], [0, 0, 1, 0], [], []>} : vector<8x16xbf16>, vector<8x16xbf16>, vector<8x8xf32> -> vector<8x8xf32>
      %cst_59 = arith.constant dense<0xFF800000> : vector<8xf32>
      %135 = vector.multi_reduction <maximumf>, %134, %cst_59 [1] : vector<8x8xf32> to vector<8xf32>
      %136 = vector.shape_cast %135 : vector<8xf32> to vector<8x1xf32>
      %137 = vector.broadcast %136 : vector<8x1xf32> to vector<8x8xf32>
      %138 = arith.subf %134, %137 : vector<8x8xf32>
      %139 = math.exp %138 : vector<8x8xf32>
      %cst_60 = arith.constant dense<0.000000e+00> : vector<8xf32>
      %140 = vector.multi_reduction <add>, %139, %cst_60 [1] : vector<8x8xf32> to vector<8xf32>
      %141 = vector.shape_cast %140 : vector<8xf32> to vector<8x1xf32>
      %142 = arith.truncf %139 : vector<8x8xf32> to vector<8x8xbf16>
      %cst_61 = arith.constant dense<0.000000e+00> : vector<8x16xf32>
      %143 = tpu.matmul %142, %133, %cst_61 {dimension_numbers = #tpu.dot_dimension_numbers<[1], [0], [0], [1], [0, 0, 1, 1], [], []>} : vector<8x8xbf16>, vector<8x16xbf16>, vector<8x16xf32> -> vector<8x16xf32>
      %144 = tpu.reciprocal %141 {approx = true} : vector<8x1xf32> -> vector<8x1xf32>
      %145 = vector.broadcast %144 : vector<8x1xf32> to vector<8x16xf32>
      %146 = arith.mulf %143, %145 : vector<8x16xf32>
      %147 = vector.extract_strided_slice %34 {offsets = [0, 112], sizes = [8, 16], strides = [1, 1]} : vector<8x384xbf16> to vector<8x16xbf16>
      %148 = vector.extract_strided_slice %34 {offsets = [0, 240], sizes = [8, 16], strides = [1, 1]} : vector<8x384xbf16> to vector<8x16xbf16>
      %149 = vector.extract_strided_slice %34 {offsets = [0, 368], sizes = [8, 16], strides = [1, 1]} : vector<8x384xbf16> to vector<8x16xbf16>
      %cst_62 = arith.constant dense<0.000000e+00> : vector<8x8xf32>
      %150 = tpu.matmul %147, %148, %cst_62 {dimension_numbers = #tpu.dot_dimension_numbers<[1], [1], [0], [0], [0, 0, 1, 0], [], []>} : vector<8x16xbf16>, vector<8x16xbf16>, vector<8x8xf32> -> vector<8x8xf32>
      %cst_63 = arith.constant dense<0xFF800000> : vector<8xf32>
      %151 = vector.multi_reduction <maximumf>, %150, %cst_63 [1] : vector<8x8xf32> to vector<8xf32>
      %152 = vector.shape_cast %151 : vector<8xf32> to vector<8x1xf32>
      %153 = vector.broadcast %152 : vector<8x1xf32> to vector<8x8xf32>
      %154 = arith.subf %150, %153 : vector<8x8xf32>
      %155 = math.exp %154 : vector<8x8xf32>
      %cst_64 = arith.constant dense<0.000000e+00> : vector<8xf32>
      %156 = vector.multi_reduction <add>, %155, %cst_64 [1] : vector<8x8xf32> to vector<8xf32>
      %157 = vector.shape_cast %156 : vector<8xf32> to vector<8x1xf32>
      %158 = arith.truncf %155 : vector<8x8xf32> to vector<8x8xbf16>
      %cst_65 = arith.constant dense<0.000000e+00> : vector<8x16xf32>
      %159 = tpu.matmul %158, %149, %cst_65 {dimension_numbers = #tpu.dot_dimension_numbers<[1], [0], [0], [1], [0, 0, 1, 1], [], []>} : vector<8x8xbf16>, vector<8x16xbf16>, vector<8x16xf32> -> vector<8x16xf32>
      %160 = tpu.reciprocal %157 {approx = true} : vector<8x1xf32> -> vector<8x1xf32>
      %161 = vector.broadcast %160 : vector<8x1xf32> to vector<8x16xf32>
      %162 = arith.mulf %159, %161 : vector<8x16xf32>
      %163 = tpu.concatenate %50, %66, %82, %98, %114, %130, %146, %162 in 1 : vector<8x16xf32>, vector<8x16xf32>, vector<8x16xf32>, vector<8x16xf32>, vector<8x16xf32>, vector<8x16xf32>, vector<8x16xf32>, vector<8x16xf32> -> vector<8x128xf32>
      %164 = arith.index_cast %31 : i32 to index
      %c0_66 = arith.constant 0 : index
      %165 = vector.load %arg14[%164, %c0_66] : memref<16x128xf32, #tpu.memory_space<vmem>>, vector<8x128xf32>
      tpu.vector_store %arg14[%164, %c0_66], %163 {strides = array<i32>} : memref<16x128xf32, #tpu.memory_space<vmem>>, vector<8x128xf32>,
    }
    %c2_i32_23 = arith.constant 2 : i32
    %c0_24 = arith.constant 0 : index
    %c0_25 = arith.constant 0 : index
    %22 = vector.load %arg14[%c0_24, %c0_25] : memref<16x128xf32, #tpu.memory_space<vmem>>, vector<16x128xf32>
    %23 = arith.truncf %22 : vector<16x128xf32> to vector<16x128xbf16>
    %c0_26 = arith.constant 0 : index
    %c0_27 = arith.constant 0 : index
    %24 = vector.load %arg10[%c0_26, %c0_27] : memref<128x128xbf16, #tpu.memory_space<vmem>>, vector<128x128xbf16>
    %cst_28 = arith.constant dense<0.000000e+00> : vector<16x128xf32>
    %25 = tpu.matmul %23, %24, %cst_28 {dimension_numbers = #tpu.dot_dimension_numbers<[1], [0], [0], [1], [0, 0, 1, 1], [], []>} : vector<16x128xbf16>, vector<128x128xbf16>, vector<16x128xf32> -> vector<16x128xf32>
    %c0_29 = arith.constant 0 : index
    %c0_30 = arith.constant 0 : index
    %26 = vector.load %arg11[%c0_29, %c0_30] : memref<1x128xf32, #tpu.memory_space<vmem>>, vector<1x128xf32>
    %27 = vector.broadcast %26 : vector<1x128xf32> to vector<16x128xf32>
    %28 = arith.addf %25, %27 : vector<16x128xf32>
    %c0_31 = arith.constant 0 : index
    %c0_32 = arith.constant 0 : index
    %29 = vector.load %arg12[%c0_31, %c0_32] : memref<16x128xf32, #tpu.memory_space<vmem>>, vector<16x128xf32>
    tpu.vector_store %arg12[%c0_31, %c0_32], %28 {strides = array<i32>} : memref<16x128xf32, #tpu.memory_space<vmem>>, vector<16x128xf32>,
    return
  }
  func.func @transform_0(%arg0: i32) -> (i32, i32) {
    %c0_i32 = arith.constant 0 : i32
    %c0_i32_0 = arith.constant 0 : i32
    return %arg0, %c0_i32 : i32, i32
  }
  func.func @transform_1(%arg0: i32) -> (i32, i32) {
    %c0_i32 = arith.constant 0 : i32
    %c0_i32_0 = arith.constant 0 : i32
    return %arg0, %c0_i32 : i32, i32
  }
  func.func @transform_2(%arg0: i32) -> (i32, i32) {
    %c0_i32 = arith.constant 0 : i32
    %c0_i32_0 = arith.constant 0 : i32
    return %arg0, %c0_i32 : i32, i32
  }
  func.func @transform_3(%arg0: i32) -> (i32, i32) {
    %c0_i32 = arith.constant 0 : i32
    %c0_i32_0 = arith.constant 0 : i32
    %c0_i32_1 = arith.constant 0 : i32
    return %c0_i32, %c0_i32_0 : i32, i32
  }
  func.func @transform_4(%arg0: i32) -> (i32, i32) {
    %c0_i32 = arith.constant 0 : i32
    %c0_i32_0 = arith.constant 0 : i32
    %c0_i32_1 = arith.constant 0 : i32
    return %c0_i32, %c0_i32_0 : i32, i32
  }
  func.func @transform_5(%arg0: i32) -> (i32, i32) {
    %c0_i32 = arith.constant 0 : i32
    %c0_i32_0 = arith.constant 0 : i32
    %c0_i32_1 = arith.constant 0 : i32
    return %c0_i32, %c0_i32_0 : i32, i32
  }
  func.func @transform_6(%arg0: i32) -> (i32, i32) {
    %c0_i32 = arith.constant 0 : i32
    %c0_i32_0 = arith.constant 0 : i32
    %c0_i32_1 = arith.constant 0 : i32
    return %c0_i32, %c0_i32_0 : i32, i32
  }
  func.func @transform_7(%arg0: i32) -> (i32, i32) {
    %c0_i32 = arith.constant 0 : i32
    %c0_i32_0 = arith.constant 0 : i32
    %c0_i32_1 = arith.constant 0 : i32
    return %c0_i32, %c0_i32_0 : i32, i32
  }
  func.func @transform_8(%arg0: i32) -> (i32, i32) {
    %c0_i32 = arith.constant 0 : i32
    %c0_i32_0 = arith.constant 0 : i32
    %c0_i32_1 = arith.constant 0 : i32
    return %c0_i32, %c0_i32_0 : i32, i32
  }
  func.func @transform_9(%arg0: i32) -> (i32, i32) {
    %c0_i32 = arith.constant 0 : i32
    %c0_i32_0 = arith.constant 0 : i32
    %c0_i32_1 = arith.constant 0 : i32
    return %c0_i32, %c0_i32_0 : i32, i32
  }
  func.func @transform_10(%arg0: i32) -> (i32, i32) {
    %c0_i32 = arith.constant 0 : i32
    %c0_i32_0 = arith.constant 0 : i32
    %c0_i32_1 = arith.constant 0 : i32
    return %c0_i32, %c0_i32_0 : i32, i32
  }
  func.func @transform_11(%arg0: i32) -> (i32, i32) {
    %c0_i32 = arith.constant 0 : i32
    %c0_i32_0 = arith.constant 0 : i32
    return %arg0, %c0_i32 : i32, i32
  }
}

</mosaic_0001>

<llo_original>
// kernel: tpu_custom_call.1
$region0: #{tpu_custom_call.1}
  #allocation0 [shape = 'u32[]', space=smem, size = 0x4, offset = 0x4, fixed_abs, tag = 'smem constant byte address 0x4 - core index']
  #allocation1 [shape = 'u32[144,128]{1,0:T(1,128)}', space=vmem, size = 0x12000, scoped, tag = 'internal scratch']
  #allocation2 [shape = 'f32[16,384]{1,0:T(8,128)}', space=vmem, size = 0x6000, scoped, tag = 'scratch operand']
  #allocation3 [shape = 'f32[16,128]{1,0:T(8,128)}', space=vmem, size = 0x2000, scoped, tag = 'scratch operand']
  %s0 = inlined_call_operand.hbm [shape: bf16[16,128], index: 0, kind: input, shape index: {}]
  %s1 = inlined_call_operand.hbm [shape: bf16[16,128], index: 1, kind: input, shape index: {}]
  %s2 = inlined_call_operand.hbm [shape: bf16[16,128], index: 2, kind: input, shape index: {}]
  %s3 = inlined_call_operand.hbm [shape: bf16[128,128], index: 3, kind: input, shape index: {}]
  %s4 = inlined_call_operand.vmem [shape: f32[1,128], index: 4, kind: input, shape index: {}]
  %s5 = inlined_call_operand.hbm [shape: bf16[128,128], index: 5, kind: input, shape index: {}]
  %s6 = inlined_call_operand.vmem [shape: f32[1,128], index: 6, kind: input, shape index: {}]
  %s7 = inlined_call_operand.hbm [shape: bf16[128,128], index: 7, kind: input, shape index: {}]
  %s8 = inlined_call_operand.vmem [shape: f32[1,128], index: 8, kind: input, shape index: {}]
  %s9 = inlined_call_operand.hbm [shape: bf16[128,128], index: 9, kind: input, shape index: {}]
  %s10 = inlined_call_operand.vmem [shape: f32[1,128], index: 10, kind: input, shape index: {}]
  %s11 = inlined_call_operand.hbm [shape: f32[16,128], index: 11, kind: output, shape index: {}]
  %s12 = sld [smem:[#allocation0]]
  $region89: #{tpu_custom_call.1} parent=0
    _
  %s14 = ssub.s32 1, %s12
  %s15 = scalar_select 0, %s14, %s12
  $region1: #{tpu_custom_call.1} parent=0
    #allocation4 [shape = 'u8[4096]{0}', space=vmem, size = 0x1000, scoped, tag = 'input window, operand 0, single buffered']
    #allocation5 [shape = 's32[1]{0}', space=sflag, size = 0x4, scoped, tag = 'scoped memory for tpu_custom_call.1']
    #allocation6 [shape = 's32[1]{0}', space=sflag, size = 0x4, scoped, tag = 'scoped memory for tpu_custom_call.1']
    #allocation7 [shape = 'u8[4096]{0}', space=vmem, size = 0x1000, scoped, tag = 'input window, operand 1, single buffered']
    #allocation8 [shape = 's32[1]{0}', space=sflag, size = 0x4, scoped, tag = 'scoped memory for tpu_custom_call.1']
    #allocation9 [shape = 'u8[4096]{0}', space=vmem, size = 0x1000, scoped, tag = 'input window, operand 2, single buffered']
    #allocation10 [shape = 'u8[32768]{0}', space=vmem, size = 0x8000, scoped, tag = 'input window, operand 3, single buffered']
    #allocation11 [shape = 's32[1]{0}', space=sflag, size = 0x4, scoped, tag = 'scoped memory for tpu_custom_call.1']
    #allocation12 [shape = 'u8[32768]{0}', space=vmem, size = 0x8000, scoped, tag = 'input window, operand 5, single buffered']
    #allocation13 [shape = 'u8[32768]{0}', space=vmem, size = 0x8000, scoped, tag = 'input window, operand 7, single buffered']
    #allocation14 [shape = 's32[1]{0}', space=sflag, size = 0x4, scoped, tag = 'scoped memory for tpu_custom_call.1']
    #allocation15 [shape = 'u8[32768]{0}', space=vmem, size = 0x8000, scoped, tag = 'input window, operand 9, single buffered']
    #allocation16 [shape = 'u8[8192]{0}', space=vmem, size = 0x2000, scoped, tag = 'output window, operand 0, single buffered']
    %16 = vsyncpa [#allocation5], 0
    %17 = vsyncpa [#allocation8], 0
    %18 = vsyncpa [#allocation11], 0
    %19 = vsyncpa [#allocation14], 0
    %20 = vsyncpa [#allocation6], 0
    // Predicated region
    $region2: #{tpu_custom_call.1} parent=1 // pred_check
      _
    $region3: #{tpu_custom_call.1} parent=1 // pred_check_branch
      %22 = sbr.rel (0) target = $region5
    $region4: #{tpu_custom_call.1} parent=1 // pred_region
      %s24 = ssub.s32 128, 128
      %25 = vsyncadd [#allocation5], %s24
      %s26 = sshll.u32 [#allocation4], 4
      %s27 = int_to_ptr.vmem [resolvable:$true] %s26
      %32 = dma.hbm_to_vmem [thread:$0]  %s0, 128, %s27, [#allocation5], 64, 64, 4
    $region5: #{tpu_custom_call.1} parent=1 // pred_fallthru
      _
    // Predicated region
    $region6: #{tpu_custom_call.1} parent=1 // pred_check
      _
    $region7: #{tpu_custom_call.1} parent=1 // pred_check_branch
      %34 = sbr.rel (0) target = $region9
    $region8: #{tpu_custom_call.1} parent=1 // pred_region
      %s36 = ssub.s32 128, 128
      %37 = vsyncadd [#allocation8], %s36
      %s38 = sshll.u32 [#allocation7], 4
      %s39 = int_to_ptr.vmem [resolvable:$true] %s38
      %44 = dma.hbm_to_vmem [thread:$0]  %s1, 128, %s39, [#allocation8], 64, 64, 4
    $region9: #{tpu_custom_call.1} parent=1 // pred_fallthru
      _
    // Predicated region
    $region10: #{tpu_custom_call.1} parent=1 // pred_check
      _
    $region11: #{tpu_custom_call.1} parent=1 // pred_check_branch
      %46 = sbr.rel (0) target = $region13
    $region12: #{tpu_custom_call.1} parent=1 // pred_region
      %s48 = ssub.s32 128, 128
      %49 = vsyncadd [#allocation8], %s48
      %s50 = sshll.u32 [#allocation9], 4
      %s51 = int_to_ptr.vmem [resolvable:$true] %s50
      %56 = dma.hbm_to_vmem [thread:$0]  %s2, 128, %s51, [#allocation8], 64, 64, 4
    $region13: #{tpu_custom_call.1} parent=1 // pred_fallthru
      _
    // Predicated region
    $region14: #{tpu_custom_call.1} parent=1 // pred_check
      _
    $region15: #{tpu_custom_call.1} parent=1 // pred_check_branch
      %58 = sbr.rel (0) target = $region17
    $region16: #{tpu_custom_call.1} parent=1 // pred_region
      %s60 = ssub.s32 1024, 1024
      %61 = vsyncadd [#allocation11], %s60
      %s62 = sshll.u32 [#allocation10], 4
      %s63 = int_to_ptr.vmem [resolvable:$true] %s62
      %68 = dma.hbm_to_vmem [thread:$0]  %s3, 1024, %s63, [#allocation11], 64, 64, 4
    $region17: #{tpu_custom_call.1} parent=1 // pred_fallthru
      _
    // Predicated region
    $region18: #{tpu_custom_call.1} parent=1 // pred_check
      _
    $region19: #{tpu_custom_call.1} parent=1 // pred_check_branch
      %70 = sbr.rel (0) target = $region21
    $region20: #{tpu_custom_call.1} parent=1 // pred_region
      _
    $region21: #{tpu_custom_call.1} parent=1 // pred_fallthru
      _
    // Predicated region
    $region22: #{tpu_custom_call.1} parent=1 // pred_check
      _
    $region23: #{tpu_custom_call.1} parent=1 // pred_check_branch
      %72 = sbr.rel (0) target = $region25
    $region24: #{tpu_custom_call.1} parent=1 // pred_region
      %s74 = ssub.s32 1024, 1024
      %75 = vsyncadd [#allocation11], %s74
      %s76 = sshll.u32 [#allocation12], 4
      %s77 = int_to_ptr.vmem [resolvable:$true] %s76
      %82 = dma.hbm_to_vmem [thread:$0]  %s5, 1024, %s77, [#allocation11], 64, 64, 4
    $region25: #{tpu_custom_call.1} parent=1 // pred_fallthru
      _
    // Predicated region
    $region26: #{tpu_custom_call.1} parent=1 // pred_check
      _
    $region27: #{tpu_custom_call.1} parent=1 // pred_check_branch
      %84 = sbr.rel (0) target = $region29
    $region28: #{tpu_custom_call.1} parent=1 // pred_region
      _
    $region29: #{tpu_custom_call.1} parent=1 // pred_fallthru
      _
    // Predicated region
    $region30: #{tpu_custom_call.1} parent=1 // pred_check
      _
    $region31: #{tpu_custom_call.1} parent=1 // pred_check_branch
      %86 = sbr.rel (0) target = $region33
    $region32: #{tpu_custom_call.1} parent=1 // pred_region
      %s88 = ssub.s32 1024, 1024
      %89 = vsyncadd [#allocation14], %s88
      %s90 = sshll.u32 [#allocation13], 4
      %s91 = int_to_ptr.vmem [resolvable:$true] %s90
      %96 = dma.hbm_to_vmem [thread:$0]  %s7, 1024, %s91, [#allocation14], 64, 64, 4
    $region33: #{tpu_custom_call.1} parent=1 // pred_fallthru
      _
    // Predicated region
    $region34: #{tpu_custom_call.1} parent=1 // pred_check
      _
    $region35: #{tpu_custom_call.1} parent=1 // pred_check_branch
      %98 = sbr.rel (0) target = $region37
    $region36: #{tpu_custom_call.1} parent=1 // pred_region
      _
    $region37: #{tpu_custom_call.1} parent=1 // pred_fallthru
      _
    // Predicated region
    $region38: #{tpu_custom_call.1} parent=1 // pred_check
      _
    $region39: #{tpu_custom_call.1} parent=1 // pred_check_branch
      %100 = sbr.rel (0) target = $region41
    $region40: #{tpu_custom_call.1} parent=1 // pred_region
      %s102 = ssub.s32 1024, 1024
      %103 = vsyncadd [#allocation14], %s102
      %s104 = sshll.u32 [#allocation15], 4
      %s105 = int_to_ptr.vmem [resolvable:$true] %s104
      %110 = dma.hbm_to_vmem [thread:$0]  %s9, 1024, %s105, [#allocation14], 64, 64, 4
    $region41: #{tpu_custom_call.1} parent=1 // pred_fallthru
      _
    // Predicated region
    $region42: #{tpu_custom_call.1} parent=1 // pred_check
      _
    $region43: #{tpu_custom_call.1} parent=1 // pred_check_branch
      %112 = sbr.rel (0) target = $region45
    $region44: #{tpu_custom_call.1} parent=1 // pred_region
      _
    $region45: #{tpu_custom_call.1} parent=1 // pred_fallthru
      _
    // Predicated region
    $region46: #{tpu_custom_call.1} parent=1 // pred_check
      _
    $region47: #{tpu_custom_call.1} parent=1 // pred_check_branch
      %114 = sbr.rel (0) target = $region49
    $region48: #{tpu_custom_call.1} parent=1 // pred_region
      %115 = dma.done [#allocation5], 128
    $region49: #{tpu_custom_call.1} parent=1 // pred_fallthru
      _
    // Predicated region
    $region50: #{tpu_custom_call.1} parent=1 // pred_check
      _
    $region51: #{tpu_custom_call.1} parent=1 // pred_check_branch
      %117 = sbr.rel (0) target = $region53
    $region52: #{tpu_custom_call.1} parent=1 // pred_region
      %118 = dma.done [#allocation8], 128
    $region53: #{tpu_custom_call.1} parent=1 // pred_fallthru
      _
    // Predicated region
    $region54: #{tpu_custom_call.1} parent=1 // pred_check
      _
    $region55: #{tpu_custom_call.1} parent=1 // pred_check_branch
      %120 = sbr.rel (0) target = $region57
    $region56: #{tpu_custom_call.1} parent=1 // pred_region
      %121 = dma.done [#allocation8], 128
    $region57: #{tpu_custom_call.1} parent=1 // pred_fallthru
      _
    // Predicated region
    $region58: #{tpu_custom_call.1} parent=1 // pred_check
      _
    $region59: #{tpu_custom_call.1} parent=1 // pred_check_branch
      %123 = sbr.rel (0) target = $region61
    $region60: #{tpu_custom_call.1} parent=1 // pred_region
      %124 = dma.done [#allocation11], 1024
    $region61: #{tpu_custom_call.1} parent=1 // pred_fallthru
      _
    // Predicated region
    $region62: #{tpu_custom_call.1} parent=1 // pred_check
      _
    $region63: #{tpu_custom_call.1} parent=1 // pred_check_branch
      %126 = sbr.rel (0) target = $region65
    $region64: #{tpu_custom_call.1} parent=1 // pred_region
      %127 = dma.done [#allocation11], 1024
    $region65: #{tpu_custom_call.1} parent=1 // pred_fallthru
      _
    // Predicated region
    $region66: #{tpu_custom_call.1} parent=1 // pred_check
      _
    $region67: #{tpu_custom_call.1} parent=1 // pred_check_branch
      %129 = sbr.rel (0) target = $region69
    $region68: #{tpu_custom_call.1} parent=1 // pred_region
      %130 = dma.done [#allocation14], 1024
    $region69: #{tpu_custom_call.1} parent=1 // pred_fallthru
      _
    // Predicated region
    $region70: #{tpu_custom_call.1} parent=1 // pred_check
      _
    $region71: #{tpu_custom_call.1} parent=1 // pred_check_branch
      %132 = sbr.rel (0) target = $region73
    $region72: #{tpu_custom_call.1} parent=1 // pred_region
      %133 = dma.done [#allocation14], 1024
    $region73: #{tpu_custom_call.1} parent=1 // pred_fallthru
      _
    %v135 = vld [vmem:[#allocation4] sm:$0xf]
    %v136 = vld [vmem:[#allocation4 + $0x4] sm:$0xf]
    %v137 = vld [vmem:[#allocation10] sm:$0xf]
    %v138 = vld [vmem:[#allocation10 + $0x4] sm:$0xf]
    %v139 = vld [vmem:[#allocation10 + $0x8] sm:$0xf]
    %v140 = vld [vmem:[#allocation10 + $0xc] sm:$0xf]
    %v141 = vld [vmem:[#allocation10 + $0x10] sm:$0xf]
    %v142 = vld [vmem:[#allocation10 + $0x14] sm:$0xf]
    %v143 = vld [vmem:[#allocation10 + $0x18] sm:$0xf]
    %v144 = vld [vmem:[#allocation10 + $0x1c] sm:$0xf]
    %v145 = vld [vmem:[#allocation10 + $0x20] sm:$0xf]
    %v146 = vld [vmem:[#allocation10 + $0x24] sm:$0xf]
    %v147 = vld [vmem:[#allocation10 + $0x28] sm:$0xf]
    %v148 = vld [vmem:[#allocation10 + $0x2c] sm:$0xf]
    %v149 = vld [vmem:[#allocation10 + $0x30] sm:$0xf]
    %v150 = vld [vmem:[#allocation10 + $0x34] sm:$0xf]
    %v151 = vld [vmem:[#allocation10 + $0x38] sm:$0xf]
    %v152 = vld [vmem:[#allocation10 + $0x3c] sm:$0xf]
    %v153 = vld [vmem:[%s4] sm:$0x1]
    %v155 = vlaneseq
    %v156 = vshrl.u32 %v155, 7
    %v157 = vsub.s32 0, %v156
    %v158 = vrot.slane %v153, %v157
    %v162 = vunpack.c.l.b16 %v135
    %v163 = vunpack.c.l.b16 %v136
    %v164 = vpack.c.b16 %v163, %v162
    %v182 = vunpack.c.l.b16 %v137
    %v183 = vunpack.c.l.b16 %v138
    %v184 = vunpack.c.l.b16 %v139
    %v185 = vunpack.c.l.b16 %v140
    %v186 = vunpack.c.l.b16 %v141
    %v187 = vunpack.c.l.b16 %v142
    %v188 = vunpack.c.l.b16 %v143
    %v189 = vunpack.c.l.b16 %v144
    %v190 = vunpack.c.l.b16 %v145
    %v191 = vunpack.c.l.b16 %v146
    %v192 = vunpack.c.l.b16 %v147
    %v193 = vunpack.c.l.b16 %v148
    %v194 = vunpack.c.l.b16 %v149
    %v195 = vunpack.c.l.b16 %v150
    %v196 = vunpack.c.l.b16 %v151
    %v197 = vunpack.c.l.b16 %v152
    %v198 = vpack.c.b16 %v183, %v182
    %v199 = vpack.c.b16 %v185, %v184
    %v200 = vpack.c.b16 %v187, %v186
    %v201 = vpack.c.b16 %v189, %v188
    %v202 = vpack.c.b16 %v191, %v190
    %v203 = vpack.c.b16 %v193, %v192
    %v204 = vpack.c.b16 %v195, %v194
    %v205 = vpack.c.b16 %v197, %v196
    %214 = vmatprep.subr.bf16.mxu0 0
    %215 = vmatpush1.bf16.msra.mxu0 %v198
    %216 = vmatprep.subr.bf16.mxu0 0
    %217 = vmatpush1.bf16.msra.mxu0 %v199
    %218 = vmatprep.subr.bf16.mxu0 0
    %219 = vmatpush1.bf16.msra.mxu0 %v200
    %220 = vmatprep.subr.bf16.mxu0 0
    %221 = vmatpush1.bf16.msra.mxu0 %v201
    %222 = vmatprep.subr.bf16.mxu0 0
    %223 = vmatpush1.bf16.msra.mxu0 %v202
    %224 = vmatprep.subr.bf16.mxu0 0
    %225 = vmatpush1.bf16.msra.mxu0 %v203
    %226 = vmatprep.subr.bf16.mxu0 0
    %227 = vmatpush1.bf16.msra.mxu0 %v204
    %228 = vmatprep.subr.bf16.mxu0 0
    %229 = vmatpush1.bf16.msra.mxu0 %v205
    %230 = vmatprep.subr.bf16.mxu0 0
    %231 = vmatpush1.bf16.msra.mxu0 0
    %232 = vmatprep.subr.bf16.mxu0 0
    %233 = vmatpush1.bf16.msra.mxu0 0
    %234 = vmatprep.subr.bf16.mxu0 0
    %235 = vmatpush1.bf16.msra.mxu0 0
    %236 = vmatprep.subr.bf16.mxu0 0
    %237 = vmatpush1.bf16.msra.mxu0 0
    %238 = vmatprep.subr.bf16.mxu0 0
    %239 = vmatpush1.bf16.msra.mxu0 0
    %240 = vmatprep.subr.bf16.mxu0 0
    %241 = vmatpush1.bf16.msra.mxu0 0
    %242 = vmatprep.subr.bf16.mxu0 0
    %243 = vmatpush1.bf16.msra.mxu0 0
    %244 = vmatprep.subr.bf16.mxu0 0
    %245 = vmatpush1.bf16.msra.mxu0 0
    %246 = vmatprep.mubr.bf16.mxu0 0
    %247 = vmatmul.mubr.bf16.gmra.mrb[0].mxu0 %v164
    %v248 = vpop.f32.mrb[0].mxu0
    %v249 = vadd.f32 %v158, %v248
    %v250 = vpop.f32.mrb[0].mxu0
    %v251 = vpop.f32.mrb[0].mxu0
    %v252 = vadd.f32 %v158, %v251
    %v253 = vpop.f32.mrb[0].mxu0
    %254 = vdwg.mxu0
    %255 = vst [vmem:[#allocation2] sm:$0xff] %v249
    %256 = vst [vmem:[#allocation2 + $0x18] sm:$0xff] %v252
    %v257 = vld [vmem:[#allocation7] sm:$0xf]
    %v258 = vld [vmem:[#allocation7 + $0x4] sm:$0xf]
    %v259 = vld [vmem:[#allocation12] sm:$0xf]
    %v260 = vld [vmem:[#allocation12 + $0x4] sm:$0xf]
    %v261 = vld [vmem:[#allocation12 + $0x8] sm:$0xf]
    %v262 = vld [vmem:[#allocation12 + $0xc] sm:$0xf]
    %v263 = vld [vmem:[#allocation12 + $0x10] sm:$0xf]
    %v264 = vld [vmem:[#allocation12 + $0x14] sm:$0xf]
    %v265 = vld [vmem:[#allocation12 + $0x18] sm:$0xf]
    %v266 = vld [vmem:[#allocation12 + $0x1c] sm:$0xf]
    %v267 = vld [vmem:[#allocation12 + $0x20] sm:$0xf]
    %v268 = vld [vmem:[#allocation12 + $0x24] sm:$0xf]
    %v269 = vld [vmem:[#allocation12 + $0x28] sm:$0xf]
    %v270 = vld [vmem:[#allocation12 + $0x2c] sm:$0xf]
    %v271 = vld [vmem:[#allocation12 + $0x30] sm:$0xf]
    %v272 = vld [vmem:[#allocation12 + $0x34] sm:$0xf]
    %v273 = vld [vmem:[#allocation12 + $0x38] sm:$0xf]
    %v274 = vld [vmem:[#allocation12 + $0x3c] sm:$0xf]
    %v275 = vld [vmem:[%s6] sm:$0x1]
    %v277 = vlaneseq
    %v278 = vshrl.u32 %v277, 7
    %v279 = vsub.s32 0, %v278
    %v280 = vrot.slane %v275, %v279
    %v284 = vunpack.c.l.b16 %v257
    %v285 = vunpack.c.l.b16 %v258
    %v286 = vpack.c.b16 %v285, %v284
    %v304 = vunpack.c.l.b16 %v259
    %v305 = vunpack.c.l.b16 %v260
    %v306 = vunpack.c.l.b16 %v261
    %v307 = vunpack.c.l.b16 %v262
    %v308 = vunpack.c.l.b16 %v263
    %v309 = vunpack.c.l.b16 %v264
    %v310 = vunpack.c.l.b16 %v265
    %v311 = vunpack.c.l.b16 %v266
    %v312 = vunpack.c.l.b16 %v267
    %v313 = vunpack.c.l.b16 %v268
    %v314 = vunpack.c.l.b16 %v269
    %v315 = vunpack.c.l.b16 %v270
    %v316 = vunpack.c.l.b16 %v271
    %v317 = vunpack.c.l.b16 %v272
    %v318 = vunpack.c.l.b16 %v273
    %v319 = vunpack.c.l.b16 %v274
    %v320 = vpack.c.b16 %v305, %v304
    %v321 = vpack.c.b16 %v307, %v306
    %v322 = vpack.c.b16 %v309, %v308
    %v323 = vpack.c.b16 %v311, %v310
    %v324 = vpack.c.b16 %v313, %v312
    %v325 = vpack.c.b16 %v315, %v314
    %v326 = vpack.c.b16 %v317, %v316
    %v327 = vpack.c.b16 %v319, %v318
    %336 = vmatprep.subr.bf16.mxu0 0
    %337 = vmatpush1.bf16.msra.mxu0 %v320
    %338 = vmatprep.subr.bf16.mxu0 0
    %339 = vmatpush1.bf16.msra.mxu0 %v321
    %340 = vmatprep.subr.bf16.mxu0 0
    %341 = vmatpush1.bf16.msra.mxu0 %v322
    %342 = vmatprep.subr.bf16.mxu0 0
    %343 = vmatpush1.bf16.msra.mxu0 %v323
    %344 = vmatprep.subr.bf16.mxu0 0
    %345 = vmatpush1.bf16.msra.mxu0 %v324
    %346 = vmatprep.subr.bf16.mxu0 0
    %347 = vmatpush1.bf16.msra.mxu0 %v325
    %348 = vmatprep.subr.bf16.mxu0 0
    %349 = vmatpush1.bf16.msra.mxu0 %v326
    %350 = vmatprep.subr.bf16.mxu0 0
    %351 = vmatpush1.bf16.msra.mxu0 %v327
    %352 = vmatprep.subr.bf16.mxu0 0
    %353 = vmatpush1.bf16.msra.mxu0 0
    %354 = vmatprep.subr.bf16.mxu0 0
    %355 = vmatpush1.bf16.msra.mxu0 0
    %356 = vmatprep.subr.bf16.mxu0 0
    %357 = vmatpush1.bf16.msra.mxu0 0
    %358 = vmatprep.subr.bf16.mxu0 0
    %359 = vmatpush1.bf16.msra.mxu0 0
    %360 = vmatprep.subr.bf16.mxu0 0
    %361 = vmatpush1.bf16.msra.mxu0 0
    %362 = vmatprep.subr.bf16.mxu0 0
    %363 = vmatpush1.bf16.msra.mxu0 0
    %364 = vmatprep.subr.bf16.mxu0 0
    %365 = vmatpush1.bf16.msra.mxu0 0
    %366 = vmatprep.subr.bf16.mxu0 0
    %367 = vmatpush1.bf16.msra.mxu0 0
    %368 = vmatprep.mubr.bf16.mxu0 0
    %369 = vmatmul.mubr.bf16.gmra.mrb[0].mxu0 %v286
    %v370 = vpop.f32.mrb[0].mxu0
    %v371 = vadd.f32 %v280, %v370
    %v372 = vpop.f32.mrb[0].mxu0
    %v373 = vpop.f32.mrb[0].mxu0
    %v374 = vadd.f32 %v280, %v373
    %v375 = vpop.f32.mrb[0].mxu0
    %376 = vdwg.mxu0
    %377 = vst [vmem:[#allocation2 + $0x8] sm:$0xff] %v371
    %378 = vst [vmem:[#allocation2 + $0x20] sm:$0xff] %v374
    %v379 = vld [vmem:[#allocation9] sm:$0xf]
    %v380 = vld [vmem:[#allocation9 + $0x4] sm:$0xf]
    %v381 = vld [vmem:[#allocation13] sm:$0xf]
    %v382 = vld [vmem:[#allocation13 + $0x4] sm:$0xf]
    %v383 = vld [vmem:[#allocation13 + $0x8] sm:$0xf]
    %v384 = vld [vmem:[#allocation13 + $0xc] sm:$0xf]
    %v385 = vld [vmem:[#allocation13 + $0x10] sm:$0xf]
    %v386 = vld [vmem:[#allocation13 + $0x14] sm:$0xf]
    %v387 = vld [vmem:[#allocation13 + $0x18] sm:$0xf]
    %v388 = vld [vmem:[#allocation13 + $0x1c] sm:$0xf]
    %v389 = vld [vmem:[#allocation13 + $0x20] sm:$0xf]
    %v390 = vld [vmem:[#allocation13 + $0x24] sm:$0xf]
    %v391 = vld [vmem:[#allocation13 + $0x28] sm:$0xf]
    %v392 = vld [vmem:[#allocation13 + $0x2c] sm:$0xf]
    %v393 = vld [vmem:[#allocation13 + $0x30] sm:$0xf]
    %v394 = vld [vmem:[#allocation13 + $0x34] sm:$0xf]
    %v395 = vld [vmem:[#allocation13 + $0x38] sm:$0xf]
    %v396 = vld [vmem:[#allocation13 + $0x3c] sm:$0xf]
    %v397 = vld [vmem:[%s8] sm:$0x1]
    %v399 = vlaneseq
    %v400 = vshrl.u32 %v399, 7
    %v401 = vsub.s32 0, %v400
    %v402 = vrot.slane %v397, %v401
    %v406 = vunpack.c.l.b16 %v379
    %v407 = vunpack.c.l.b16 %v380
    %v408 = vpack.c.b16 %v407, %v406
    %v426 = vunpack.c.l.b16 %v381
    %v427 = vunpack.c.l.b16 %v382
    %v428 = vunpack.c.l.b16 %v383
    %v429 = vunpack.c.l.b16 %v384
    %v430 = vunpack.c.l.b16 %v385
    %v431 = vunpack.c.l.b16 %v386
    %v432 = vunpack.c.l.b16 %v387
    %v433 = vunpack.c.l.b16 %v388
    %v434 = vunpack.c.l.b16 %v389
    %v435 = vunpack.c.l.b16 %v390
    %v436 = vunpack.c.l.b16 %v391
    %v437 = vunpack.c.l.b16 %v392
    %v438 = vunpack.c.l.b16 %v393
    %v439 = vunpack.c.l.b16 %v394
    %v440 = vunpack.c.l.b16 %v395
    %v441 = vunpack.c.l.b16 %v396
    %v442 = vpack.c.b16 %v427, %v426
    %v443 = vpack.c.b16 %v429, %v428
    %v444 = vpack.c.b16 %v431, %v430
    %v445 = vpack.c.b16 %v433, %v432
    %v446 = vpack.c.b16 %v435, %v434
    %v447 = vpack.c.b16 %v437, %v436
    %v448 = vpack.c.b16 %v439, %v438
    %v449 = vpack.c.b16 %v441, %v440
    %458 = vmatprep.subr.bf16.mxu0 0
    %459 = vmatpush1.bf16.msra.mxu0 %v442
    %460 = vmatprep.subr.bf16.mxu0 0
    %461 = vmatpush1.bf16.msra.mxu0 %v443
    %462 = vmatprep.subr.bf16.mxu0 0
    %463 = vmatpush1.bf16.msra.mxu0 %v444
    %464 = vmatprep.subr.bf16.mxu0 0
    %465 = vmatpush1.bf16.msra.mxu0 %v445
    %466 = vmatprep.subr.bf16.mxu0 0
    %467 = vmatpush1.bf16.msra.mxu0 %v446
    %468 = vmatprep.subr.bf16.mxu0 0
    %469 = vmatpush1.bf16.msra.mxu0 %v447
    %470 = vmatprep.subr.bf16.mxu0 0
    %471 = vmatpush1.bf16.msra.mxu0 %v448
    %472 = vmatprep.subr.bf16.mxu0 0
    %473 = vmatpush1.bf16.msra.mxu0 %v449
    %474 = vmatprep.subr.bf16.mxu0 0
    %475 = vmatpush1.bf16.msra.mxu0 0
    %476 = vmatprep.subr.bf16.mxu0 0
    %477 = vmatpush1.bf16.msra.mxu0 0
    %478 = vmatprep.subr.bf16.mxu0 0
    %479 = vmatpush1.bf16.msra.mxu0 0
    %480 = vmatprep.subr.bf16.mxu0 0
    %481 = vmatpush1.bf16.msra.mxu0 0
    %482 = vmatprep.subr.bf16.mxu0 0
    %483 = vmatpush1.bf16.msra.mxu0 0
    %484 = vmatprep.subr.bf16.mxu0 0
    %485 = vmatpush1.bf16.msra.mxu0 0
    %486 = vmatprep.subr.bf16.mxu0 0
    %487 = vmatpush1.bf16.msra.mxu0 0
    %488 = vmatprep.subr.bf16.mxu0 0
    %489 = vmatpush1.bf16.msra.mxu0 0
    %490 = vmatprep.mubr.bf16.mxu0 0
    %491 = vmatmul.mubr.bf16.gmra.mrb[0].mxu0 %v408
    %v492 = vpop.f32.mrb[0].mxu0
    %v493 = vadd.f32 %v402, %v492
    %v494 = vpop.f32.mrb[0].mxu0
    %v495 = vpop.f32.mrb[0].mxu0
    %v496 = vadd.f32 %v402, %v495
    %v497 = vpop.f32.mrb[0].mxu0
    %498 = vdwg.mxu0
    %499 = vst [vmem:[#allocation2 + $0x10] sm:$0xff] %v493
    %500 = vst [vmem:[#allocation2 + $0x28] sm:$0xff] %v496
    loop: start=0, step=1, limit=2
    $region74: #{tpu_custom_call.1} parent=1 // loop_pre_header
      _
    $region75: #{tpu_custom_call.1} parent=1 // loop_header
      %s502 = sphi 0, %s506
      %p503 = scmp.ge.s32.totalorder %s502, 2
    $region76: #{tpu_custom_call.1} parent=1 // loop_header_branch
      %505 = sbr.rel (%p503) target = $region80
    $region77: #{tpu_custom_call.1} parent=1 // loop_body
      %s507 = smul.u32 %s502, 8
      %s508 = sshra.s32 %s507, 3
      %s509 = sand.u32 %s507, 7
      %s510 = smul.u32 %s508, 3
      %s511 = smul.addr %s510, 8
      %s512 = scalar_lea.vmem [#allocation2], %s511
      %v513 = vld [vmem:[%s512] sm:$0xff]
      %v514 = vld [vmem:[%s512 + $0x8] sm:$0xff]
      %v515 = vld [vmem:[%s512 + $0x10] sm:$0xff]
      %v516 = vpack.c.bf16 %v513, %v513
      %v517 = vpack.c.bf16 %v514, %v514
      %v518 = vpack.c.bf16 %v515, %v515
      %vm519 = vcmask 130048
      %v521 = vsel %vm519, %v516, 0
      %v524 = vsel %vm519, %v517, 0
      %526 = vmatprep.subr.bf16.mxu0 0
      %527 = vmatpush1.bf16.xpose.msra.mxu0 %v524
      %528 = vmatprep.subr.bf16.mxu0 0
      %529 = vmatpush1.bf16.xpose.msra.mxu0 0
      %530 = vmatprep.subr.bf16.mxu0 0
      %531 = vmatpush1.bf16.xpose.msra.mxu0 0
      %532 = vmatprep.subr.bf16.mxu0 0
      %533 = vmatpush1.bf16.xpose.msra.mxu0 0
      %534 = vmatprep.subr.bf16.mxu0 0
      %535 = vmatpush1.bf16.xpose.msra.mxu0 0
      %536 = vmatprep.subr.bf16.mxu0 0
      %537 = vmatpush1.bf16.xpose.msra.mxu0 0
      %538 = vmatprep.subr.bf16.mxu0 0
      %539 = vmatpush1.bf16.xpose.msra.mxu0 0
      %540 = vmatprep.subr.bf16.mxu0 0
      %541 = vmatpush1.bf16.xpose.msra.mxu0 0
      %542 = vmatprep.subr.bf16.mxu0 0
      %543 = vmatpush1.bf16.xpose.msra.mxu0 0
      %544 = vmatprep.subr.bf16.mxu0 0
      %545 = vmatpush1.bf16.xpose.msra.mxu0 0
      %546 = vmatprep.subr.bf16.mxu0 0
      %547 = vmatpush1.bf16.xpose.msra.mxu0 0
      %548 = vmatprep.subr.bf16.mxu0 0
      %549 = vmatpush1.bf16.xpose.msra.mxu0 0
      %550 = vmatprep.subr.bf16.mxu0 0
      %551 = vmatpush1.bf16.xpose.msra.mxu0 0
      %552 = vmatprep.subr.bf16.mxu0 0
      %553 = vmatpush1.bf16.xpose.msra.mxu0 0
      %554 = vmatprep.subr.bf16.mxu0 0
      %555 = vmatpush1.bf16.xpose.msra.mxu0 0
      %556 = vmatprep.subr.bf16.mxu0 0
      %557 = vmatpush1.bf16.xpose.msra.mxu0 0
      %558 = vmatprep.mubr.bf16.mxu0 0
      %559 = vmatmul.mubr.bf16.gmra.mrb[0].mxu0 %v521
      %v560 = vpop.f32.mrb[0].mxu0
      %v561 = vadd.f32 0.0, %v560
      %v562 = vpop.f32.mrb[0].mxu0
      %v563 = vpop.f32.mrb[0].mxu0
      %v564 = vpop.f32.mrb[0].mxu0
      %565 = vdwg.mxu0
      %vm566 = vcmask 64512
      %v567 = vsel %vm566, %v561, -inf
      %568 = vmax.xlane.f32.xlu0 %v567
      %v569 = vpop.xlane.xlu0 %568
      %v570 = vsub.f32 %v561, %v569
      %v571 = vmul.f32 %v570, 1.442695
      %v572 = vpow.pop %v571
      %v573 = vsel %vm566, %v572, 0.0
      %574 = vadd.xlane.f32.xlu0 %v573
      %v575 = vpop.xlane.xlu0 %574
      %v576 = vpack.c.bf16 %v572, %v572
      %v578 = vsel %vm566, %v576, 0
      %vm580 = vcmask 1043456
      %v582 = vsel %vm580, %v518, 0
      %584 = vmatprep.subr.bf16.mxu0 0
      %585 = vmatpush1.bf16.msra.mxu0 %v582
      %586 = vmatprep.subr.bf16.mxu0 0
      %587 = vmatpush1.bf16.msra.mxu0 0
      %588 = vmatprep.subr.bf16.mxu0 0
      %589 = vmatpush1.bf16.msra.mxu0 0
      %590 = vmatprep.subr.bf16.mxu0 0
      %591 = vmatpush1.bf16.msra.mxu0 0
      %592 = vmatprep.subr.bf16.mxu0 0
      %593 = vmatpush1.bf16.msra.mxu0 0
      %594 = vmatprep.subr.bf16.mxu0 0
      %595 = vmatpush1.bf16.msra.mxu0 0
      %596 = vmatprep.subr.bf16.mxu0 0
      %597 = vmatpush1.bf16.msra.mxu0 0
      %598 = vmatprep.subr.bf16.mxu0 0
      %599 = vmatpush1.bf16.msra.mxu0 0
      %600 = vmatprep.subr.bf16.mxu0 0
      %601 = vmatpush1.bf16.msra.mxu0 0
      %602 = vmatprep.subr.bf16.mxu0 0
      %603 = vmatpush1.bf16.msra.mxu0 0
      %604 = vmatprep.subr.bf16.mxu0 0
      %605 = vmatpush1.bf16.msra.mxu0 0
      %606 = vmatprep.subr.bf16.mxu0 0
      %607 = vmatpush1.bf16.msra.mxu0 0
      %608 = vmatprep.subr.bf16.mxu0 0
      %609 = vmatpush1.bf16.msra.mxu0 0
      %610 = vmatprep.subr.bf16.mxu0 0
      %611 = vmatpush1.bf16.msra.mxu0 0
      %612 = vmatprep.subr.bf16.mxu0 0
      %613 = vmatpush1.bf16.msra.mxu0 0
      %614 = vmatprep.subr.bf16.mxu0 0
      %615 = vmatpush1.bf16.msra.mxu0 0
      %616 = vmatprep.mubr.bf16.mxu0 0
      %617 = vmatmul.mubr.bf16.gmra.mrb[0].mxu0 %v578
      %v618 = vpop.f32.mrb[0].mxu0
      %v619 = vadd.f32 0.0, %v618
      %v620 = vpop.f32.mrb[0].mxu0
      %v621 = vpop.f32.mrb[0].mxu0
      %v622 = vpop.f32.mrb[0].mxu0
      %623 = vdwg.mxu0
      %v624 = vrcp.pop %v575
      %v625 = vmul.f32 %v619, %v624
      %627 = vrot.lane.b32.xlu0 %v516, 112
      %v628 = vpop.permute.xlu0 %627
      %630 = vrot.lane.b32.xlu0 %v517, 112
      %v631 = vpop.permute.xlu0 %630
      %v633 = vsel %vm519, %v628, 0
      %v636 = vsel %vm519, %v631, 0
      %638 = vmatprep.subr.bf16.mxu0 0
      %639 = vmatpush1.bf16.xpose.msra.mxu0 %v636
      %640 = vmatprep.subr.bf16.mxu0 0
      %641 = vmatpush1.bf16.xpose.msra.mxu0 0
      %642 = vmatprep.subr.bf16.mxu0 0
      %643 = vmatpush1.bf16.xpose.msra.mxu0 0
      %644 = vmatprep.subr.bf16.mxu0 0
      %645 = vmatpush1.bf16.xpose.msra.mxu0 0
      %646 = vmatprep.subr.bf16.mxu0 0
      %647 = vmatpush1.bf16.xpose.msra.mxu0 0
      %648 = vmatprep.subr.bf16.mxu0 0
      %649 = vmatpush1.bf16.xpose.msra.mxu0 0
      %650 = vmatprep.subr.bf16.mxu0 0
      %651 = vmatpush1.bf16.xpose.msra.mxu0 0
      %652 = vmatprep.subr.bf16.mxu0 0
      %653 = vmatpush1.bf16.xpose.msra.mxu0 0
      %654 = vmatprep.subr.bf16.mxu0 0
      %655 = vmatpush1.bf16.xpose.msra.mxu0 0
      %656 = vmatprep.subr.bf16.mxu0 0
      %657 = vmatpush1.bf16.xpose.msra.mxu0 0
      %658 = vmatprep.subr.bf16.mxu0 0
      %659 = vmatpush1.bf16.xpose.msra.mxu0 0
      %660 = vmatprep.subr.bf16.mxu0 0
      %661 = vmatpush1.bf16.xpose.msra.mxu0 0
      %662 = vmatprep.subr.bf16.mxu0 0
      %663 = vmatpush1.bf16.xpose.msra.mxu0 0
      %664 = vmatprep.subr.bf16.mxu0 0
      %665 = vmatpush1.bf16.xpose.msra.mxu0 0
      %666 = vmatprep.subr.bf16.mxu0 0
      %667 = vmatpush1.bf16.xpose.msra.mxu0 0
      %668 = vmatprep.subr.bf16.mxu0 0
      %669 = vmatpush1.bf16.xpose.msra.mxu0 0
      %670 = vmatprep.mubr.bf16.mxu0 0
      %671 = vmatmul.mubr.bf16.gmra.mrb[0].mxu0 %v633
      %v672 = vpop.f32.mrb[0].mxu0
      %v673 = vadd.f32 0.0, %v672
      %v674 = vpop.f32.mrb[0].mxu0
      %v675 = vpop.f32.mrb[0].mxu0
      %v676 = vpop.f32.mrb[0].mxu0
      %677 = vdwg.mxu0
      %v678 = vsel %vm566, %v673, -inf
      %679 = vmax.xlane.f32.xlu0 %v678
      %v680 = vpop.xlane.xlu0 %679
      %v681 = vsub.f32 %v673, %v680
      %v682 = vmul.f32 %v681, 1.442695
      %v683 = vpow.pop %v682
      %v684 = vsel %vm566, %v683, 0.0
      %685 = vadd.xlane.f32.xlu0 %v684
      %v686 = vpop.xlane.xlu0 %685
      %v687 = vpack.c.bf16 %v683, %v683
      %689 = vrot.lane.b32.xlu0 %v518, 112
      %v690 = vpop.permute.xlu0 %689
      %v692 = vsel %vm566, %v687, 0
      %v695 = vsel %vm580, %v690, 0
      %697 = vmatprep.subr.bf16.mxu0 0
      %698 = vmatpush1.bf16.msra.mxu0 %v695
      %699 = vmatprep.subr.bf16.mxu0 0
      %700 = vmatpush1.bf16.msra.mxu0 0
      %701 = vmatprep.subr.bf16.mxu0 0
      %702 = vmatpush1.bf16.msra.mxu0 0
      %703 = vmatprep.subr.bf16.mxu0 0
      %704 = vmatpush1.bf16.msra.mxu0 0
      %705 = vmatprep.subr.bf16.mxu0 0
      %706 = vmatpush1.bf16.msra.mxu0 0
      %707 = vmatprep.subr.bf16.mxu0 0
      %708 = vmatpush1.bf16.msra.mxu0 0
      %709 = vmatprep.subr.bf16.mxu0 0
      %710 = vmatpush1.bf16.msra.mxu0 0
      %711 = vmatprep.subr.bf16.mxu0 0
      %712 = vmatpush1.bf16.msra.mxu0 0
      %713 = vmatprep.subr.bf16.mxu0 0
      %714 = vmatpush1.bf16.msra.mxu0 0
      %715 = vmatprep.subr.bf16.mxu0 0
      %716 = vmatpush1.bf16.msra.mxu0 0
      %717 = vmatprep.subr.bf16.mxu0 0
      %718 = vmatpush1.bf16.msra.mxu0 0
      %719 = vmatprep.subr.bf16.mxu0 0
      %720 = vmatpush1.bf16.msra.mxu0 0
      %721 = vmatprep.subr.bf16.mxu0 0
      %722 = vmatpush1.bf16.msra.mxu0 0
      %723 = vmatprep.subr.bf16.mxu0 0
      %724 = vmatpush1.bf16.msra.mxu0 0
      %725 = vmatprep.subr.bf16.mxu0 0
      %726 = vmatpush1.bf16.msra.mxu0 0
      %727 = vmatprep.subr.bf16.mxu0 0
      %728 = vmatpush1.bf16.msra.mxu0 0
      %729 = vmatprep.mubr.bf16.mxu0 0
      %730 = vmatmul.mubr.bf16.gmra.mrb[0].mxu0 %v692
      %v731 = vpop.f32.mrb[0].mxu0
      %v732 = vadd.f32 0.0, %v731
      %v733 = vpop.f32.mrb[0].mxu0
      %v734 = vpop.f32.mrb[0].mxu0
      %v735 = vpop.f32.mrb[0].mxu0
      %736 = vdwg.mxu0
      %v737 = vrcp.pop %v686
      %v738 = vmul.f32 %v732, %v737
      %739 = vrot.lane.b32.xlu0 %v516, 96
      %v740 = vpop.permute.xlu0 %739
      %741 = vrot.lane.b32.xlu0 %v517, 96
      %v742 = vpop.permute.xlu0 %741
      %v744 = vsel %vm519, %v740, 0
      %v747 = vsel %vm519, %v742, 0
      %749 = vmatprep.subr.bf16.mxu0 0
      %750 = vmatpush1.bf16.xpose.msra.mxu0 %v747
      %751 = vmatprep.subr.bf16.mxu0 0
      %752 = vmatpush1.bf16.xpose.msra.mxu0 0
      %753 = vmatprep.subr.bf16.mxu0 0
      %754 = vmatpush1.bf16.xpose.msra.mxu0 0
      %755 = vmatprep.subr.bf16.mxu0 0
      %756 = vmatpush1.bf16.xpose.msra.mxu0 0
      %757 = vmatprep.subr.bf16.mxu0 0
      %758 = vmatpush1.bf16.xpose.msra.mxu0 0
      %759 = vmatprep.subr.bf16.mxu0 0
      %760 = vmatpush1.bf16.xpose.msra.mxu0 0
      %761 = vmatprep.subr.bf16.mxu0 0
      %762 = vmatpush1.bf16.xpose.msra.mxu0 0
      %763 = vmatprep.subr.bf16.mxu0 0
      %764 = vmatpush1.bf16.xpose.msra.mxu0 0
      %765 = vmatprep.subr.bf16.mxu0 0
      %766 = vmatpush1.bf16.xpose.msra.mxu0 0
      %767 = vmatprep.subr.bf16.mxu0 0
      %768 = vmatpush1.bf16.xpose.msra.mxu0 0
      %769 = vmatprep.subr.bf16.mxu0 0
      %770 = vmatpush1.bf16.xpose.msra.mxu0 0
      %771 = vmatprep.subr.bf16.mxu0 0
      %772 = vmatpush1.bf16.xpose.msra.mxu0 0
      %773 = vmatprep.subr.bf16.mxu0 0
      %774 = vmatpush1.bf16.xpose.msra.mxu0 0
      %775 = vmatprep.subr.bf16.mxu0 0
      %776 = vmatpush1.bf16.xpose.msra.mxu0 0
      %777 = vmatprep.subr.bf16.mxu0 0
      %778 = vmatpush1.bf16.xpose.msra.mxu0 0
      %779 = vmatprep.subr.bf16.mxu0 0
      %780 = vmatpush1.bf16.xpose.msra.mxu0 0
      %781 = vmatprep.mubr.bf16.mxu0 0
      %782 = vmatmul.mubr.bf16.gmra.mrb[0].mxu0 %v744
      %v783 = vpop.f32.mrb[0].mxu0
      %v784 = vadd.f32 0.0, %v783
      %v785 = vpop.f32.mrb[0].mxu0
      %v786 = vpop.f32.mrb[0].mxu0
      %v787 = vpop.f32.mrb[0].mxu0
      %788 = vdwg.mxu0
      %v789 = vsel %vm566, %v784, -inf
      %790 = vmax.xlane.f32.xlu0 %v789
      %v791 = vpop.xlane.xlu0 %790
      %v792 = vsub.f32 %v784, %v791
      %v793 = vmul.f32 %v792, 1.442695
      %v794 = vpow.pop %v793
      %v795 = vsel %vm566, %v794, 0.0
      %796 = vadd.xlane.f32.xlu0 %v795
      %v797 = vpop.xlane.xlu0 %796
      %v798 = vpack.c.bf16 %v794, %v794
      %799 = vrot.lane.b32.xlu0 %v518, 96
      %v800 = vpop.permute.xlu0 %799
      %v802 = vsel %vm566, %v798, 0
      %v805 = vsel %vm580, %v800, 0
      %807 = vmatprep.subr.bf16.mxu0 0
      %808 = vmatpush1.bf16.msra.mxu0 %v805
      %809 = vmatprep.subr.bf16.mxu0 0
      %810 = vmatpush1.bf16.msra.mxu0 0
      %811 = vmatprep.subr.bf16.mxu0 0
      %812 = vmatpush1.bf16.msra.mxu0 0
      %813 = vmatprep.subr.bf16.mxu0 0
      %814 = vmatpush1.bf16.msra.mxu0 0
      %815 = vmatprep.subr.bf16.mxu0 0
      %816 = vmatpush1.bf16.msra.mxu0 0
      %817 = vmatprep.subr.bf16.mxu0 0
      %818 = vmatpush1.bf16.msra.mxu0 0
      %819 = vmatprep.subr.bf16.mxu0 0
      %820 = vmatpush1.bf16.msra.mxu0 0
      %821 = vmatprep.subr.bf16.mxu0 0
      %822 = vmatpush1.bf16.msra.mxu0 0
      %823 = vmatprep.subr.bf16.mxu0 0
      %824 = vmatpush1.bf16.msra.mxu0 0
      %825 = vmatprep.subr.bf16.mxu0 0
      %826 = vmatpush1.bf16.msra.mxu0 0
      %827 = vmatprep.subr.bf16.mxu0 0
      %828 = vmatpush1.bf16.msra.mxu0 0
      %829 = vmatprep.subr.bf16.mxu0 0
      %830 = vmatpush1.bf16.msra.mxu0 0
      %831 = vmatprep.subr.bf16.mxu0 0
      %832 = vmatpush1.bf16.msra.mxu0 0
      %833 = vmatprep.subr.bf16.mxu0 0
      %834 = vmatpush1.bf16.msra.mxu0 0
      %835 = vmatprep.subr.bf16.mxu0 0
      %836 = vmatpush1.bf16.msra.mxu0 0
      %837 = vmatprep.subr.bf16.mxu0 0
      %838 = vmatpush1.bf16.msra.mxu0 0
      %839 = vmatprep.mubr.bf16.mxu0 0
      %840 = vmatmul.mubr.bf16.gmra.mrb[0].mxu0 %v802
      %v841 = vpop.f32.mrb[0].mxu0
      %v842 = vadd.f32 0.0, %v841
      %v843 = vpop.f32.mrb[0].mxu0
      %v844 = vpop.f32.mrb[0].mxu0
      %v845 = vpop.f32.mrb[0].mxu0
      %846 = vdwg.mxu0
      %v847 = vrcp.pop %v797
      %v848 = vmul.f32 %v842, %v847
      %849 = vrot.lane.b32.xlu0 %v516, 80
      %v850 = vpop.permute.xlu0 %849
      %851 = vrot.lane.b32.xlu0 %v517, 80
      %v852 = vpop.permute.xlu0 %851
      %v854 = vsel %vm519, %v850, 0
      %v857 = vsel %vm519, %v852, 0
      %859 = vmatprep.subr.bf16.mxu0 0
      %860 = vmatpush1.bf16.xpose.msra.mxu0 %v857
      %861 = vmatprep.subr.bf16.mxu0 0
      %862 = vmatpush1.bf16.xpose.msra.mxu0 0
      %863 = vmatprep.subr.bf16.mxu0 0
      %864 = vmatpush1.bf16.xpose.msra.mxu0 0
      %865 = vmatprep.subr.bf16.mxu0 0
      %866 = vmatpush1.bf16.xpose.msra.mxu0 0
      %867 = vmatprep.subr.bf16.mxu0 0
      %868 = vmatpush1.bf16.xpose.msra.mxu0 0
      %869 = vmatprep.subr.bf16.mxu0 0
      %870 = vmatpush1.bf16.xpose.msra.mxu0 0
      %871 = vmatprep.subr.bf16.mxu0 0
      %872 = vmatpush1.bf16.xpose.msra.mxu0 0
      %873 = vmatprep.subr.bf16.mxu0 0
      %874 = vmatpush1.bf16.xpose.msra.mxu0 0
      %875 = vmatprep.subr.bf16.mxu0 0
      %876 = vmatpush1.bf16.xpose.msra.mxu0 0
      %877 = vmatprep.subr.bf16.mxu0 0
      %878 = vmatpush1.bf16.xpose.msra.mxu0 0
      %879 = vmatprep.subr.bf16.mxu0 0
      %880 = vmatpush1.bf16.xpose.msra.mxu0 0
      %881 = vmatprep.subr.bf16.mxu0 0
      %882 = vmatpush1.bf16.xpose.msra.mxu0 0
      %883 = vmatprep.subr.bf16.mxu0 0
      %884 = vmatpush1.bf16.xpose.msra.mxu0 0
      %885 = vmatprep.subr.bf16.mxu0 0
      %886 = vmatpush1.bf16.xpose.msra.mxu0 0
      %887 = vmatprep.subr.bf16.mxu0 0
      %888 = vmatpush1.bf16.xpose.msra.mxu0 0
      %889 = vmatprep.subr.bf16.mxu0 0
      %890 = vmatpush1.bf16.xpose.msra.mxu0 0
      %891 = vmatprep.mubr.bf16.mxu0 0
      %892 = vmatmul.mubr.bf16.gmra.mrb[0].mxu0 %v854
      %v893 = vpop.f32.mrb[0].mxu0
      %v894 = vadd.f32 0.0, %v893
      %v895 = vpop.f32.mrb[0].mxu0
      %v896 = vpop.f32.mrb[0].mxu0
      %v897 = vpop.f32.mrb[0].mxu0
      %898 = vdwg.mxu0
      %v899 = vsel %vm566, %v894, -inf
      %900 = vmax.xlane.f32.xlu0 %v899
      %v901 = vpop.xlane.xlu0 %900
      %v902 = vsub.f32 %v894, %v901
      %v903 = vmul.f32 %v902, 1.442695
      %v904 = vpow.pop %v903
      %v905 = vsel %vm566, %v904, 0.0
      %906 = vadd.xlane.f32.xlu0 %v905
      %v907 = vpop.xlane.xlu0 %906
      %v908 = vpack.c.bf16 %v904, %v904
      %909 = vrot.lane.b32.xlu0 %v518, 80
      %v910 = vpop.permute.xlu0 %909
      %v912 = vsel %vm566, %v908, 0
      %v915 = vsel %vm580, %v910, 0
      %917 = vmatprep.subr.bf16.mxu0 0
      %918 = vmatpush1.bf16.msra.mxu0 %v915
      %919 = vmatprep.subr.bf16.mxu0 0
      %920 = vmatpush1.bf16.msra.mxu0 0
      %921 = vmatprep.subr.bf16.mxu0 0
      %922 = vmatpush1.bf16.msra.mxu0 0
      %923 = vmatprep.subr.bf16.mxu0 0
      %924 = vmatpush1.bf16.msra.mxu0 0
      %925 = vmatprep.subr.bf16.mxu0 0
      %926 = vmatpush1.bf16.msra.mxu0 0
      %927 = vmatprep.subr.bf16.mxu0 0
      %928 = vmatpush1.bf16.msra.mxu0 0
      %929 = vmatprep.subr.bf16.mxu0 0
      %930 = vmatpush1.bf16.msra.mxu0 0
      %931 = vmatprep.subr.bf16.mxu0 0
      %932 = vmatpush1.bf16.msra.mxu0 0
      %933 = vmatprep.subr.bf16.mxu0 0
      %934 = vmatpush1.bf16.msra.mxu0 0
      %935 = vmatprep.subr.bf16.mxu0 0
      %936 = vmatpush1.bf16.msra.mxu0 0
      %937 = vmatprep.subr.bf16.mxu0 0
      %938 = vmatpush1.bf16.msra.mxu0 0
      %939 = vmatprep.subr.bf16.mxu0 0
      %940 = vmatpush1.bf16.msra.mxu0 0
      %941 = vmatprep.subr.bf16.mxu0 0
      %942 = vmatpush1.bf16.msra.mxu0 0
      %943 = vmatprep.subr.bf16.mxu0 0
      %944 = vmatpush1.bf16.msra.mxu0 0
      %945 = vmatprep.subr.bf16.mxu0 0
      %946 = vmatpush1.bf16.msra.mxu0 0
      %947 = vmatprep.subr.bf16.mxu0 0
      %948 = vmatpush1.bf16.msra.mxu0 0
      %949 = vmatprep.mubr.bf16.mxu0 0
      %950 = vmatmul.mubr.bf16.gmra.mrb[0].mxu0 %v912
      %v951 = vpop.f32.mrb[0].mxu0
      %v952 = vadd.f32 0.0, %v951
      %v953 = vpop.f32.mrb[0].mxu0
      %v954 = vpop.f32.mrb[0].mxu0
      %v955 = vpop.f32.mrb[0].mxu0
      %956 = vdwg.mxu0
      %v957 = vrcp.pop %v907
      %v958 = vmul.f32 %v952, %v957
      %959 = vrot.lane.b32.xlu0 %v516, 64
      %v960 = vpop.permute.xlu0 %959
      %961 = vrot.lane.b32.xlu0 %v517, 64
      %v962 = vpop.permute.xlu0 %961
      %v964 = vsel %vm519, %v960, 0
      %v967 = vsel %vm519, %v962, 0
      %969 = vmatprep.subr.bf16.mxu0 0
      %970 = vmatpush1.bf16.xpose.msra.mxu0 %v967
      %971 = vmatprep.subr.bf16.mxu0 0
      %972 = vmatpush1.bf16.xpose.msra.mxu0 0
      %973 = vmatprep.subr.bf16.mxu0 0
      %974 = vmatpush1.bf16.xpose.msra.mxu0 0
      %975 = vmatprep.subr.bf16.mxu0 0
      %976 = vmatpush1.bf16.xpose.msra.mxu0 0
      %977 = vmatprep.subr.bf16.mxu0 0
      %978 = vmatpush1.bf16.xpose.msra.mxu0 0
      %979 = vmatprep.subr.bf16.mxu0 0
      %980 = vmatpush1.bf16.xpose.msra.mxu0 0
      %981 = vmatprep.subr.bf16.mxu0 0
      %982 = vmatpush1.bf16.xpose.msra.mxu0 0
      %983 = vmatprep.subr.bf16.mxu0 0
      %984 = vmatpush1.bf16.xpose.msra.mxu0 0
      %985 = vmatprep.subr.bf16.mxu0 0
      %986 = vmatpush1.bf16.xpose.msra.mxu0 0
      %987 = vmatprep.subr.bf16.mxu0 0
      %988 = vmatpush1.bf16.xpose.msra.mxu0 0
      %989 = vmatprep.subr.bf16.mxu0 0
      %990 = vmatpush1.bf16.xpose.msra.mxu0 0
      %991 = vmatprep.subr.bf16.mxu0 0
      %992 = vmatpush1.bf16.xpose.msra.mxu0 0
      %993 = vmatprep.subr.bf16.mxu0 0
      %994 = vmatpush1.bf16.xpose.msra.mxu0 0
      %995 = vmatprep.subr.bf16.mxu0 0
      %996 = vmatpush1.bf16.xpose.msra.mxu0 0
      %997 = vmatprep.subr.bf16.mxu0 0
      %998 = vmatpush1.bf16.xpose.msra.mxu0 0
      %999 = vmatprep.subr.bf16.mxu0 0
      %1000 = vmatpush1.bf16.xpose.msra.mxu0 0
      %1001 = vmatprep.mubr.bf16.mxu0 0
      %1002 = vmatmul.mubr.bf16.gmra.mrb[0].mxu0 %v964
      %v1003 = vpop.f32.mrb[0].mxu0
      %v1004 = vadd.f32 0.0, %v1003
      %v1005 = vpop.f32.mrb[0].mxu0
      %v1006 = vpop.f32.mrb[0].mxu0
      %v1007 = vpop.f32.mrb[0].mxu0
      %1008 = vdwg.mxu0
      %v1009 = vsel %vm566, %v1004, -inf
      %1010 = vmax.xlane.f32.xlu0 %v1009
      %v1011 = vpop.xlane.xlu0 %1010
      %v1012 = vsub.f32 %v1004, %v1011
      %v1013 = vmul.f32 %v1012, 1.442695
      %v1014 = vpow.pop %v1013
      %v1015 = vsel %vm566, %v1014, 0.0
      %1016 = vadd.xlane.f32.xlu0 %v1015
      %v1017 = vpop.xlane.xlu0 %1016
      %v1018 = vpack.c.bf16 %v1014, %v1014
      %1019 = vrot.lane.b32.xlu0 %v518, 64
      %v1020 = vpop.permute.xlu0 %1019
      %v1022 = vsel %vm566, %v1018, 0
      %v1025 = vsel %vm580, %v1020, 0
      %1027 = vmatprep.subr.bf16.mxu0 0
      %1028 = vmatpush1.bf16.msra.mxu0 %v1025
      %1029 = vmatprep.subr.bf16.mxu0 0
      %1030 = vmatpush1.bf16.msra.mxu0 0
      %1031 = vmatprep.subr.bf16.mxu0 0
      %1032 = vmatpush1.bf16.msra.mxu0 0
      %1033 = vmatprep.subr.bf16.mxu0 0
      %1034 = vmatpush1.bf16.msra.mxu0 0
      %1035 = vmatprep.subr.bf16.mxu0 0
      %1036 = vmatpush1.bf16.msra.mxu0 0
      %1037 = vmatprep.subr.bf16.mxu0 0
      %1038 = vmatpush1.bf16.msra.mxu0 0
      %1039 = vmatprep.subr.bf16.mxu0 0
      %1040 = vmatpush1.bf16.msra.mxu0 0
      %1041 = vmatprep.subr.bf16.mxu0 0
      %1042 = vmatpush1.bf16.msra.mxu0 0
      %1043 = vmatprep.subr.bf16.mxu0 0
      %1044 = vmatpush1.bf16.msra.mxu0 0
      %1045 = vmatprep.subr.bf16.mxu0 0
      %1046 = vmatpush1.bf16.msra.mxu0 0
      %1047 = vmatprep.subr.bf16.mxu0 0
      %1048 = vmatpush1.bf16.msra.mxu0 0
      %1049 = vmatprep.subr.bf16.mxu0 0
      %1050 = vmatpush1.bf16.msra.mxu0 0
      %1051 = vmatprep.subr.bf16.mxu0 0
      %1052 = vmatpush1.bf16.msra.mxu0 0
      %1053 = vmatprep.subr.bf16.mxu0 0
      %1054 = vmatpush1.bf16.msra.mxu0 0
      %1055 = vmatprep.subr.bf16.mxu0 0
      %1056 = vmatpush1.bf16.msra.mxu0 0
      %1057 = vmatprep.subr.bf16.mxu0 0
      %1058 = vmatpush1.bf16.msra.mxu0 0
      %1059 = vmatprep.mubr.bf16.mxu0 0
      %1060 = vmatmul.mubr.bf16.gmra.mrb[0].mxu0 %v1022
      %v1061 = vpop.f32.mrb[0].mxu0
      %v1062 = vadd.f32 0.0, %v1061
      %v1063 = vpop.f32.mrb[0].mxu0
      %v1064 = vpop.f32.mrb[0].mxu0
      %v1065 = vpop.f32.mrb[0].mxu0
      %1066 = vdwg.mxu0
      %v1067 = vrcp.pop %v1017
      %v1068 = vmul.f32 %v1062, %v1067
      %1069 = vrot.lane.b32.xlu0 %v516, 48
      %v1070 = vpop.permute.xlu0 %1069
      %1071 = vrot.lane.b32.xlu0 %v517, 48
      %v1072 = vpop.permute.xlu0 %1071
      %v1074 = vsel %vm519, %v1070, 0
      %v1077 = vsel %vm519, %v1072, 0
      %1079 = vmatprep.subr.bf16.mxu0 0
      %1080 = vmatpush1.bf16.xpose.msra.mxu0 %v1077
      %1081 = vmatprep.subr.bf16.mxu0 0
      %1082 = vmatpush1.bf16.xpose.msra.mxu0 0
      %1083 = vmatprep.subr.bf16.mxu0 0
      %1084 = vmatpush1.bf16.xpose.msra.mxu0 0
      %1085 = vmatprep.subr.bf16.mxu0 0
      %1086 = vmatpush1.bf16.xpose.msra.mxu0 0
      %1087 = vmatprep.subr.bf16.mxu0 0
      %1088 = vmatpush1.bf16.xpose.msra.mxu0 0
      %1089 = vmatprep.subr.bf16.mxu0 0
      %1090 = vmatpush1.bf16.xpose.msra.mxu0 0
      %1091 = vmatprep.subr.bf16.mxu0 0
      %1092 = vmatpush1.bf16.xpose.msra.mxu0 0
      %1093 = vmatprep.subr.bf16.mxu0 0
      %1094 = vmatpush1.bf16.xpose.msra.mxu0 0
      %1095 = vmatprep.subr.bf16.mxu0 0
      %1096 = vmatpush1.bf16.xpose.msra.mxu0 0
      %1097 = vmatprep.subr.bf16.mxu0 0
      %1098 = vmatpush1.bf16.xpose.msra.mxu0 0
      %1099 = vmatprep.subr.bf16.mxu0 0
      %1100 = vmatpush1.bf16.xpose.msra.mxu0 0
      %1101 = vmatprep.subr.bf16.mxu0 0
      %1102 = vmatpush1.bf16.xpose.msra.mxu0 0
      %1103 = vmatprep.subr.bf16.mxu0 0
      %1104 = vmatpush1.bf16.xpose.msra.mxu0 0
      %1105 = vmatprep.subr.bf16.mxu0 0
      %1106 = vmatpush1.bf16.xpose.msra.mxu0 0
      %1107 = vmatprep.subr.bf16.mxu0 0
      %1108 = vmatpush1.bf16.xpose.msra.mxu0 0
      %1109 = vmatprep.subr.bf16.mxu0 0
      %1110 = vmatpush1.bf16.xpose.msra.mxu0 0
      %1111 = vmatprep.mubr.bf16.mxu0 0
      %1112 = vmatmul.mubr.bf16.gmra.mrb[0].mxu0 %v1074
      %v1113 = vpop.f32.mrb[0].mxu0
      %v1114 = vadd.f32 0.0, %v1113
      %v1115 = vpop.f32.mrb[0].mxu0
      %v1116 = vpop.f32.mrb[0].mxu0
      %v1117 = vpop.f32.mrb[0].mxu0
      %1118 = vdwg.mxu0
      %v1119 = vsel %vm566, %v1114, -inf
      %1120 = vmax.xlane.f32.xlu0 %v1119
      %v1121 = vpop.xlane.xlu0 %1120
      %v1122 = vsub.f32 %v1114, %v1121
      %v1123 = vmul.f32 %v1122, 1.442695
      %v1124 = vpow.pop %v1123
      %v1125 = vsel %vm566, %v1124, 0.0
      %1126 = vadd.xlane.f32.xlu0 %v1125
      %v1127 = vpop.xlane.xlu0 %1126
      %v1128 = vpack.c.bf16 %v1124, %v1124
      %1129 = vrot.lane.b32.xlu0 %v518, 48
      %v1130 = vpop.permute.xlu0 %1129
      %v1132 = vsel %vm566, %v1128, 0
      %v1135 = vsel %vm580, %v1130, 0
      %1137 = vmatprep.subr.bf16.mxu0 0
      %1138 = vmatpush1.bf16.msra.mxu0 %v1135
      %1139 = vmatprep.subr.bf16.mxu0 0
      %1140 = vmatpush1.bf16.msra.mxu0 0
      %1141 = vmatprep.subr.bf16.mxu0 0
      %1142 = vmatpush1.bf16.msra.mxu0 0
      %1143 = vmatprep.subr.bf16.mxu0 0
      %1144 = vmatpush1.bf16.msra.mxu0 0
      %1145 = vmatprep.subr.bf16.mxu0 0
      %1146 = vmatpush1.bf16.msra.mxu0 0
      %1147 = vmatprep.subr.bf16.mxu0 0
      %1148 = vmatpush1.bf16.msra.mxu0 0
      %1149 = vmatprep.subr.bf16.mxu0 0
      %1150 = vmatpush1.bf16.msra.mxu0 0
      %1151 = vmatprep.subr.bf16.mxu0 0
      %1152 = vmatpush1.bf16.msra.mxu0 0
      %1153 = vmatprep.subr.bf16.mxu0 0
      %1154 = vmatpush1.bf16.msra.mxu0 0
      %1155 = vmatprep.subr.bf16.mxu0 0
      %1156 = vmatpush1.bf16.msra.mxu0 0
      %1157 = vmatprep.subr.bf16.mxu0 0
      %1158 = vmatpush1.bf16.msra.mxu0 0
      %1159 = vmatprep.subr.bf16.mxu0 0
      %1160 = vmatpush1.bf16.msra.mxu0 0
      %1161 = vmatprep.subr.bf16.mxu0 0
      %1162 = vmatpush1.bf16.msra.mxu0 0
      %1163 = vmatprep.subr.bf16.mxu0 0
      %1164 = vmatpush1.bf16.msra.mxu0 0
      %1165 = vmatprep.subr.bf16.mxu0 0
      %1166 = vmatpush1.bf16.msra.mxu0 0
      %1167 = vmatprep.subr.bf16.mxu0 0
      %1168 = vmatpush1.bf16.msra.mxu0 0
      %1169 = vmatprep.mubr.bf16.mxu0 0
      %1170 = vmatmul.mubr.bf16.gmra.mrb[0].mxu0 %v1132
      %v1171 = vpop.f32.mrb[0].mxu0
      %v1172 = vadd.f32 0.0, %v1171
      %v1173 = vpop.f32.mrb[0].mxu0
      %v1174 = vpop.f32.mrb[0].mxu0
      %v1175 = vpop.f32.mrb[0].mxu0
      %1176 = vdwg.mxu0
      %v1177 = vrcp.pop %v1127
      %v1178 = vmul.f32 %v1172, %v1177
      %1179 = vrot.lane.b32.xlu0 %v516, 32
      %v1180 = vpop.permute.xlu0 %1179
      %1181 = vrot.lane.b32.xlu0 %v517, 32
      %v1182 = vpop.permute.xlu0 %1181
      %v1184 = vsel %vm519, %v1180, 0
      %v1187 = vsel %vm519, %v1182, 0
      %1189 = vmatprep.subr.bf16.mxu0 0
      %1190 = vmatpush1.bf16.xpose.msra.mxu0 %v1187
      %1191 = vmatprep.subr.bf16.mxu0 0
      %1192 = vmatpush1.bf16.xpose.msra.mxu0 0
      %1193 = vmatprep.subr.bf16.mxu0 0
      %1194 = vmatpush1.bf16.xpose.msra.mxu0 0
      %1195 = vmatprep.subr.bf16.mxu0 0
      %1196 = vmatpush1.bf16.xpose.msra.mxu0 0
      %1197 = vmatprep.subr.bf16.mxu0 0
      %1198 = vmatpush1.bf16.xpose.msra.mxu0 0
      %1199 = vmatprep.subr.bf16.mxu0 0
      %1200 = vmatpush1.bf16.xpose.msra.mxu0 0
      %1201 = vmatprep.subr.bf16.mxu0 0
      %1202 = vmatpush1.bf16.xpose.msra.mxu0 0
      %1203 = vmatprep.subr.bf16.mxu0 0
      %1204 = vmatpush1.bf16.xpose.msra.mxu0 0
      %1205 = vmatprep.subr.bf16.mxu0 0
      %1206 = vmatpush1.bf16.xpose.msra.mxu0 0
      %1207 = vmatprep.subr.bf16.mxu0 0
      %1208 = vmatpush1.bf16.xpose.msra.mxu0 0
      %1209 = vmatprep.subr.bf16.mxu0 0
      %1210 = vmatpush1.bf16.xpose.msra.mxu0 0
      %1211 = vmatprep.subr.bf16.mxu0 0
      %1212 = vmatpush1.bf16.xpose.msra.mxu0 0
      %1213 = vmatprep.subr.bf16.mxu0 0
      %1214 = vmatpush1.bf16.xpose.msra.mxu0 0
      %1215 = vmatprep.subr.bf16.mxu0 0
      %1216 = vmatpush1.bf16.xpose.msra.mxu0 0
      %1217 = vmatprep.subr.bf16.mxu0 0
      %1218 = vmatpush1.bf16.xpose.msra.mxu0 0
      %1219 = vmatprep.subr.bf16.mxu0 0
      %1220 = vmatpush1.bf16.xpose.msra.mxu0 0
      %1221 = vmatprep.mubr.bf16.mxu0 0
      %1222 = vmatmul.mubr.bf16.gmra.mrb[0].mxu0 %v1184
      %v1223 = vpop.f32.mrb[0].mxu0
      %v1224 = vadd.f32 0.0, %v1223
      %v1225 = vpop.f32.mrb[0].mxu0
      %v1226 = vpop.f32.mrb[0].mxu0
      %v1227 = vpop.f32.mrb[0].mxu0
      %1228 = vdwg.mxu0
      %v1229 = vsel %vm566, %v1224, -inf
      %1230 = vmax.xlane.f32.xlu0 %v1229
      %v1231 = vpop.xlane.xlu0 %1230
      %v1232 = vsub.f32 %v1224, %v1231
      %v1233 = vmul.f32 %v1232, 1.442695
      %v1234 = vpow.pop %v1233
      %v1235 = vsel %vm566, %v1234, 0.0
      %1236 = vadd.xlane.f32.xlu0 %v1235
      %v1237 = vpop.xlane.xlu0 %1236
      %v1238 = vpack.c.bf16 %v1234, %v1234
      %1239 = vrot.lane.b32.xlu0 %v518, 32
      %v1240 = vpop.permute.xlu0 %1239
      %v1242 = vsel %vm566, %v1238, 0
      %v1245 = vsel %vm580, %v1240, 0
      %1247 = vmatprep.subr.bf16.mxu0 0
      %1248 = vmatpush1.bf16.msra.mxu0 %v1245
      %1249 = vmatprep.subr.bf16.mxu0 0
      %1250 = vmatpush1.bf16.msra.mxu0 0
      %1251 = vmatprep.subr.bf16.mxu0 0
      %1252 = vmatpush1.bf16.msra.mxu0 0
      %1253 = vmatprep.subr.bf16.mxu0 0
      %1254 = vmatpush1.bf16.msra.mxu0 0
      %1255 = vmatprep.subr.bf16.mxu0 0
      %1256 = vmatpush1.bf16.msra.mxu0 0
      %1257 = vmatprep.subr.bf16.mxu0 0
      %1258 = vmatpush1.bf16.msra.mxu0 0
      %1259 = vmatprep.subr.bf16.mxu0 0
      %1260 = vmatpush1.bf16.msra.mxu0 0
      %1261 = vmatprep.subr.bf16.mxu0 0
      %1262 = vmatpush1.bf16.msra.mxu0 0
      %1263 = vmatprep.subr.bf16.mxu0 0
      %1264 = vmatpush1.bf16.msra.mxu0 0
      %1265 = vmatprep.subr.bf16.mxu0 0
      %1266 = vmatpush1.bf16.msra.mxu0 0
      %1267 = vmatprep.subr.bf16.mxu0 0
      %1268 = vmatpush1.bf16.msra.mxu0 0
      %1269 = vmatprep.subr.bf16.mxu0 0
      %1270 = vmatpush1.bf16.msra.mxu0 0
      %1271 = vmatprep.subr.bf16.mxu0 0
      %1272 = vmatpush1.bf16.msra.mxu0 0
      %1273 = vmatprep.subr.bf16.mxu0 0
      %1274 = vmatpush1.bf16.msra.mxu0 0
      %1275 = vmatprep.subr.bf16.mxu0 0
      %1276 = vmatpush1.bf16.msra.mxu0 0
      %1277 = vmatprep.subr.bf16.mxu0 0
      %1278 = vmatpush1.bf16.msra.mxu0 0
      %1279 = vmatprep.mubr.bf16.mxu0 0
      %1280 = vmatmul.mubr.bf16.gmra.mrb[0].mxu0 %v1242
      %v1281 = vpop.f32.mrb[0].mxu0
      %v1282 = vadd.f32 0.0, %v1281
      %v1283 = vpop.f32.mrb[0].mxu0
      %v1284 = vpop.f32.mrb[0].mxu0
      %v1285 = vpop.f32.mrb[0].mxu0
      %1286 = vdwg.mxu0
      %v1287 = vrcp.pop %v1237
      %v1288 = vmul.f32 %v1282, %v1287
      %1289 = vrot.lane.b32.xlu0 %v516, 16
      %v1290 = vpop.permute.xlu0 %1289
      %1291 = vrot.lane.b32.xlu0 %v517, 16
      %v1292 = vpop.permute.xlu0 %1291
      %v1294 = vsel %vm519, %v1290, 0
      %v1297 = vsel %vm519, %v1292, 0
      %1299 = vmatprep.subr.bf16.mxu0 0
      %1300 = vmatpush1.bf16.xpose.msra.mxu0 %v1297
      %1301 = vmatprep.subr.bf16.mxu0 0
      %1302 = vmatpush1.bf16.xpose.msra.mxu0 0
      %1303 = vmatprep.subr.bf16.mxu0 0
      %1304 = vmatpush1.bf16.xpose.msra.mxu0 0
      %1305 = vmatprep.subr.bf16.mxu0 0
      %1306 = vmatpush1.bf16.xpose.msra.mxu0 0
      %1307 = vmatprep.subr.bf16.mxu0 0
      %1308 = vmatpush1.bf16.xpose.msra.mxu0 0
      %1309 = vmatprep.subr.bf16.mxu0 0
      %1310 = vmatpush1.bf16.xpose.msra.mxu0 0
      %1311 = vmatprep.subr.bf16.mxu0 0
      %1312 = vmatpush1.bf16.xpose.msra.mxu0 0
      %1313 = vmatprep.subr.bf16.mxu0 0
      %1314 = vmatpush1.bf16.xpose.msra.mxu0 0
      %1315 = vmatprep.subr.bf16.mxu0 0
      %1316 = vmatpush1.bf16.xpose.msra.mxu0 0
      %1317 = vmatprep.subr.bf16.mxu0 0
      %1318 = vmatpush1.bf16.xpose.msra.mxu0 0
      %1319 = vmatprep.subr.bf16.mxu0 0
      %1320 = vmatpush1.bf16.xpose.msra.mxu0 0
      %1321 = vmatprep.subr.bf16.mxu0 0
      %1322 = vmatpush1.bf16.xpose.msra.mxu0 0
      %1323 = vmatprep.subr.bf16.mxu0 0
      %1324 = vmatpush1.bf16.xpose.msra.mxu0 0
      %1325 = vmatprep.subr.bf16.mxu0 0
      %1326 = vmatpush1.bf16.xpose.msra.mxu0 0
      %1327 = vmatprep.subr.bf16.mxu0 0
      %1328 = vmatpush1.bf16.xpose.msra.mxu0 0
      %1329 = vmatprep.subr.bf16.mxu0 0
      %1330 = vmatpush1.bf16.xpose.msra.mxu0 0
      %1331 = vmatprep.mubr.bf16.mxu0 0
      %1332 = vmatmul.mubr.bf16.gmra.mrb[0].mxu0 %v1294
      %v1333 = vpop.f32.mrb[0].mxu0
      %v1334 = vadd.f32 0.0, %v1333
      %v1335 = vpop.f32.mrb[0].mxu0
      %v1336 = vpop.f32.mrb[0].mxu0
      %v1337 = vpop.f32.mrb[0].mxu0
      %1338 = vdwg.mxu0
      %v1339 = vsel %vm566, %v1334, -inf
      %1340 = vmax.xlane.f32.xlu0 %v1339
      %v1341 = vpop.xlane.xlu0 %1340
      %v1342 = vsub.f32 %v1334, %v1341
      %v1343 = vmul.f32 %v1342, 1.442695
      %v1344 = vpow.pop %v1343
      %v1345 = vsel %vm566, %v1344, 0.0
      %1346 = vadd.xlane.f32.xlu0 %v1345
      %v1347 = vpop.xlane.xlu0 %1346
      %v1348 = vpack.c.bf16 %v1344, %v1344
      %1349 = vrot.lane.b32.xlu0 %v518, 16
      %v1350 = vpop.permute.xlu0 %1349
      %v1352 = vsel %vm566, %v1348, 0
      %v1355 = vsel %vm580, %v1350, 0
      %1357 = vmatprep.subr.bf16.mxu0 0
      %1358 = vmatpush1.bf16.msra.mxu0 %v1355
      %1359 = vmatprep.subr.bf16.mxu0 0
      %1360 = vmatpush1.bf16.msra.mxu0 0
      %1361 = vmatprep.subr.bf16.mxu0 0
      %1362 = vmatpush1.bf16.msra.mxu0 0
      %1363 = vmatprep.subr.bf16.mxu0 0
      %1364 = vmatpush1.bf16.msra.mxu0 0
      %1365 = vmatprep.subr.bf16.mxu0 0
      %1366 = vmatpush1.bf16.msra.mxu0 0
      %1367 = vmatprep.subr.bf16.mxu0 0
      %1368 = vmatpush1.bf16.msra.mxu0 0
      %1369 = vmatprep.subr.bf16.mxu0 0
      %1370 = vmatpush1.bf16.msra.mxu0 0
      %1371 = vmatprep.subr.bf16.mxu0 0
      %1372 = vmatpush1.bf16.msra.mxu0 0
      %1373 = vmatprep.subr.bf16.mxu0 0
      %1374 = vmatpush1.bf16.msra.mxu0 0
      %1375 = vmatprep.subr.bf16.mxu0 0
      %1376 = vmatpush1.bf16.msra.mxu0 0
      %1377 = vmatprep.subr.bf16.mxu0 0
      %1378 = vmatpush1.bf16.msra.mxu0 0
      %1379 = vmatprep.subr.bf16.mxu0 0
      %1380 = vmatpush1.bf16.msra.mxu0 0
      %1381 = vmatprep.subr.bf16.mxu0 0
      %1382 = vmatpush1.bf16.msra.mxu0 0
      %1383 = vmatprep.subr.bf16.mxu0 0
      %1384 = vmatpush1.bf16.msra.mxu0 0
      %1385 = vmatprep.subr.bf16.mxu0 0
      %1386 = vmatpush1.bf16.msra.mxu0 0
      %1387 = vmatprep.subr.bf16.mxu0 0
      %1388 = vmatpush1.bf16.msra.mxu0 0
      %1389 = vmatprep.mubr.bf16.mxu0 0
      %1390 = vmatmul.mubr.bf16.gmra.mrb[0].mxu0 %v1352
      %v1391 = vpop.f32.mrb[0].mxu0
      %v1392 = vadd.f32 0.0, %v1391
      %v1393 = vpop.f32.mrb[0].mxu0
      %v1394 = vpop.f32.mrb[0].mxu0
      %v1395 = vpop.f32.mrb[0].mxu0
      %1396 = vdwg.mxu0
      %v1397 = vrcp.pop %v1347
      %v1398 = vmul.f32 %v1392, %v1397
      %1400 = vrot.lane.b32.xlu0 %v738, 16
      %v1401 = vpop.permute.xlu0 %1400
      %1404 = vrot.lane.b32.xlu0 %v848, 32
      %v1405 = vpop.permute.xlu0 %1404
      %1408 = vrot.lane.b32.xlu0 %v958, 48
      %v1409 = vpop.permute.xlu0 %1408
      %1412 = vrot.lane.b32.xlu0 %v1068, 64
      %v1413 = vpop.permute.xlu0 %1412
      %1416 = vrot.lane.b32.xlu0 %v1178, 80
      %v1417 = vpop.permute.xlu0 %1416
      %1420 = vrot.lane.b32.xlu0 %v1288, 96
      %v1421 = vpop.permute.xlu0 %1420
      %1424 = vrot.lane.b32.xlu0 %v1398, 112
      %v1425 = vpop.permute.xlu0 %1424
      %v1427 = vsel %vm519, %v625, %v1401
      %vm1428 = vcmask 261120
      %v1429 = vsel %vm1428, %v1427, %v1405
      %vm1430 = vcmask 392192
      %v1431 = vsel %vm1430, %v1429, %v1409
      %vm1432 = vcmask 523264
      %v1433 = vsel %vm1432, %v1431, %v1413
      %vm1434 = vcmask 654336
      %v1435 = vsel %vm1434, %v1433, %v1417
      %vm1436 = vcmask 785408
      %v1437 = vsel %vm1436, %v1435, %v1421
      %vm1438 = vcmask 916480
      %v1439 = vsel %vm1438, %v1437, %v1425
      %s1440 = scalar_lea.vmem [#allocation3], %s507
      %1441 = vst [vmem:[%s1440] sm:$0xff] %v1439
    $region78: #{tpu_custom_call.1} parent=1 // loop_footer
      %s506 = sadd.s32 1, %s502
    $region79: #{tpu_custom_call.1} parent=1 // loop_footer_branch
      %501 = sbr.rel target = $region75
    $region80: #{tpu_custom_call.1} parent=1 // loop_exit
      _
    %v1442 = vld [vmem:[#allocation3] sm:$0xff]
    %v1443 = vld [vmem:[#allocation3 + $0x8] sm:$0xff]
    %v1444 = vpack.c.bf16 %v1443, %v1442
    %v1445 = vld [vmem:[#allocation15] sm:$0xf]
    %v1446 = vld [vmem:[#allocation15 + $0x4] sm:$0xf]
    %v1447 = vld [vmem:[#allocation15 + $0x8] sm:$0xf]
    %v1448 = vld [vmem:[#allocation15 + $0xc] sm:$0xf]
    %v1449 = vld [vmem:[#allocation15 + $0x10] sm:$0xf]
    %v1450 = vld [vmem:[#allocation15 + $0x14] sm:$0xf]
    %v1451 = vld [vmem:[#allocation15 + $0x18] sm:$0xf]
    %v1452 = vld [vmem:[#allocation15 + $0x1c] sm:$0xf]
    %v1453 = vld [vmem:[#allocation15 + $0x20] sm:$0xf]
    %v1454 = vld [vmem:[#allocation15 + $0x24] sm:$0xf]
    %v1455 = vld [vmem:[#allocation15 + $0x28] sm:$0xf]
    %v1456 = vld [vmem:[#allocation15 + $0x2c] sm:$0xf]
    %v1457 = vld [vmem:[#allocation15 + $0x30] sm:$0xf]
    %v1458 = vld [vmem:[#allocation15 + $0x34] sm:$0xf]
    %v1459 = vld [vmem:[#allocation15 + $0x38] sm:$0xf]
    %v1460 = vld [vmem:[#allocation15 + $0x3c] sm:$0xf]
    %v1461 = vld [vmem:[%s10] sm:$0x1]
    %v1463 = vlaneseq
    %v1464 = vshrl.u32 %v1463, 7
    %v1465 = vsub.s32 0, %v1464
    %v1466 = vrot.slane %v1461, %v1465
    %v1484 = vunpack.c.l.b16 %v1445
    %v1485 = vunpack.c.l.b16 %v1446
    %v1486 = vunpack.c.l.b16 %v1447
    %v1487 = vunpack.c.l.b16 %v1448
    %v1488 = vunpack.c.l.b16 %v1449
    %v1489 = vunpack.c.l.b16 %v1450
    %v1490 = vunpack.c.l.b16 %v1451
    %v1491 = vunpack.c.l.b16 %v1452
    %v1492 = vunpack.c.l.b16 %v1453
    %v1493 = vunpack.c.l.b16 %v1454
    %v1494 = vunpack.c.l.b16 %v1455
    %v1495 = vunpack.c.l.b16 %v1456
    %v1496 = vunpack.c.l.b16 %v1457
    %v1497 = vunpack.c.l.b16 %v1458
    %v1498 = vunpack.c.l.b16 %v1459
    %v1499 = vunpack.c.l.b16 %v1460
    %v1500 = vpack.c.b16 %v1485, %v1484
    %v1501 = vpack.c.b16 %v1487, %v1486
    %v1502 = vpack.c.b16 %v1489, %v1488
    %v1503 = vpack.c.b16 %v1491, %v1490
    %v1504 = vpack.c.b16 %v1493, %v1492
    %v1505 = vpack.c.b16 %v1495, %v1494
    %v1506 = vpack.c.b16 %v1497, %v1496
    %v1507 = vpack.c.b16 %v1499, %v1498
    %1516 = vmatprep.subr.bf16.mxu0 0
    %1517 = vmatpush1.bf16.msra.mxu0 %v1500
    %1518 = vmatprep.subr.bf16.mxu0 0
    %1519 = vmatpush1.bf16.msra.mxu0 %v1501
    %1520 = vmatprep.subr.bf16.mxu0 0
    %1521 = vmatpush1.bf16.msra.mxu0 %v1502
    %1522 = vmatprep.subr.bf16.mxu0 0
    %1523 = vmatpush1.bf16.msra.mxu0 %v1503
    %1524 = vmatprep.subr.bf16.mxu0 0
    %1525 = vmatpush1.bf16.msra.mxu0 %v1504
    %1526 = vmatprep.subr.bf16.mxu0 0
    %1527 = vmatpush1.bf16.msra.mxu0 %v1505
    %1528 = vmatprep.subr.bf16.mxu0 0
    %1529 = vmatpush1.bf16.msra.mxu0 %v1506
    %1530 = vmatprep.subr.bf16.mxu0 0
    %1531 = vmatpush1.bf16.msra.mxu0 %v1507
    %1532 = vmatprep.subr.bf16.mxu0 0
    %1533 = vmatpush1.bf16.msra.mxu0 0
    %1534 = vmatprep.subr.bf16.mxu0 0
    %1535 = vmatpush1.bf16.msra.mxu0 0
    %1536 = vmatprep.subr.bf16.mxu0 0
    %1537 = vmatpush1.bf16.msra.mxu0 0
    %1538 = vmatprep.subr.bf16.mxu0 0
    %1539 = vmatpush1.bf16.msra.mxu0 0
    %1540 = vmatprep.subr.bf16.mxu0 0
    %1541 = vmatpush1.bf16.msra.mxu0 0
    %1542 = vmatprep.subr.bf16.mxu0 0
    %1543 = vmatpush1.bf16.msra.mxu0 0
    %1544 = vmatprep.subr.bf16.mxu0 0
    %1545 = vmatpush1.bf16.msra.mxu0 0
    %1546 = vmatprep.subr.bf16.mxu0 0
    %1547 = vmatpush1.bf16.msra.mxu0 0
    %1548 = vmatprep.mubr.bf16.mxu0 0
    %1549 = vmatmul.mubr.bf16.gmra.mrb[0].mxu0 %v1444
    %v1550 = vpop.f32.mrb[0].mxu0
    %v1551 = vadd.f32 %v1466, %v1550
    %v1552 = vpop.f32.mrb[0].mxu0
    %v1553 = vpop.f32.mrb[0].mxu0
    %v1554 = vadd.f32 %v1466, %v1553
    %v1555 = vpop.f32.mrb[0].mxu0
    %1556 = vdwg.mxu0
    %1557 = vst [vmem:[#allocation16] sm:$0xff] %v1551
    %1558 = vst [vmem:[#allocation16 + $0x8] sm:$0xff] %v1554
    // Predicated region
    $region81: #{tpu_custom_call.1} parent=1 // pred_check
      _
    $region82: #{tpu_custom_call.1} parent=1 // pred_check_branch
      %1560 = sbr.rel (0) target = $region84
    $region83: #{tpu_custom_call.1} parent=1 // pred_region
      %s1562 = ssub.s32 256, 256
      %1563 = vsyncadd [#allocation6], %s1562
      %s1564 = sshll.u32 [#allocation16], 4
      %s1565 = int_to_ptr.vmem [resolvable:$true] %s1564
      %1570 = dma.vmem_to_hbm [thread:$0]  %s1565, 256, %s11, [#allocation6], 128, 128, 8
    $region84: #{tpu_custom_call.1} parent=1 // pred_fallthru
      _
    // Predicated region
    $region85: #{tpu_custom_call.1} parent=1 // pred_check
      _
    $region86: #{tpu_custom_call.1} parent=1 // pred_check_branch
      %1572 = sbr.rel (0) target = $region88
    $region87: #{tpu_custom_call.1} parent=1 // pred_region
      %1573 = dma.done [#allocation6], 256
    $region88: #{tpu_custom_call.1} parent=1 // pred_fallthru
      _
    %1574 = vsyncpa [#allocation5], 1
    %1575 = vsyncpa [#allocation8], 1
    %1576 = vsyncpa [#allocation11], 1
    %1577 = vsyncpa [#allocation14], 1
    %1578 = vsyncpa [#allocation6], 1

</llo_original>
